<compile_context>
chip_gen: v5e
topology: v5e:2x2
jax: 0.10.0
libtpu: 0.0.40
codegen_flags: <defaults>
</compile_context>

<pallas_src>
import functools

import jax
import jax.numpy as jnp
from jax.experimental import pallas as pl
from jax.experimental.pallas import tpu as pltpu

LANE = 128


def _round_up(x, m):
    return (x + m - 1) // m * m


def _tiles_for(n):
    """Pad N and pick (tm, tk) so both ALWAYS divide n_pad."""
    n128 = _round_up(n, LANE)
    if n128 >= 2048:
        # Large graph: quantum = lcm(tm, tk) = 2048 guarantees divisibility.
        return _round_up(n128, 2048), 1024, 2048
    # Small graph: pad to the next power of two so big tiles always divide.
    n_pad = max(LANE, pl.next_power_of_2(n128))
    tm = max(LANE, min(1024, n_pad // 2))   # >=2 row tiles when possible
    tk = n_pad
    return n_pad, tm, tk


# --------------------------- kernels ---------------------------------------

def _xw_kernel(x_ref, w_ref, dinv_ref, o_ref):
    """o = dinv_row * (x @ w); bf16 inputs, f32 MXU accumulate, bf16 out."""
    xw = jnp.dot(x_ref[...], w_ref[...], preferred_element_type=jnp.float32)
    o_ref[...] = (xw * dinv_ref[...]).astype(o_ref.dtype)


def _agg_kernel(a_ref, xw_ref, dinv_ref, b_ref, o_ref, *acc_scratch,
                apply_relu: bool):
    """Row-tiled, k-accumulated  o = dinv_row * (A @ XW_scaled) + b  (+ReLU).

    If no scratch is supplied the (f32) output block -- VMEM-resident across
    the reduction axis -- is used as the accumulator directly.
    """
    acc_ref = acc_scratch[0] if acc_scratch else o_ref
    k = pl.program_id(1)

    @pl.when(k == 0)
    def _():
        acc_ref[...] = jnp.zeros_like(acc_ref)

    acc_ref[...] += jnp.dot(a_ref[...], xw_ref[...],
                            preferred_element_type=jnp.float32)

    @pl.when(k == pl.num_programs(1) - 1)
    def _():
        out = acc_ref[...] * dinv_ref[...] + b_ref[...]
        if apply_relu:
            out = jnp.maximum(out, 0.0)
        o_ref[...] = out.astype(o_ref.dtype)


# --------------------------- pallas_call wrappers ---------------------------

def _scaled_xw(x_pad, w_pad, dinv, tm):
    n_pad, f_pad = x_pad.shape
    out_pad = w_pad.shape[1]
    return pl.pallas_call(
        _xw_kernel,
        out_shape=jax.ShapeDtypeStruct((n_pad, out_pad), jnp.bfloat16),
        grid=(n_pad // tm,),
        in_specs=[
            pl.BlockSpec((tm, f_pad), lambda i: (i, 0)),
            pl.BlockSpec((f_pad, out_pad), lambda i: (0, 0)),
            pl.BlockSpec((tm, 1), lambda i: (i, 0)),
        ],
        out_specs=pl.BlockSpec((tm, out_pad), lambda i: (i, 0)),
        compiler_params=pltpu.CompilerParams(
            dimension_semantics=("parallel",)),
    )(x_pad, w_pad, dinv)


def _aggregate(a_bf16, xw_bf16, dinv, b_pad, tm, tk, apply_relu, out_dtype):
    n_pad = a_bf16.shape[0]
    out_pad = xw_bf16.shape[1]
    # f32 outputs accumulate in-place in the resident output block; bf16
    # outputs need a separate f32 accumulator for precision.
    use_scratch = out_dtype != jnp.float32
    scratch = [pltpu.VMEM((tm, out_pad), jnp.float32)] if use_scratch else []
    kernel = functools.partial(_agg_kernel, apply_relu=apply_relu)
    return pl.pallas_call(
        kernel,
        out_shape=jax.ShapeDtypeStruct((n_pad, out_pad), out_dtype),
        grid=(n_pad // tm, n_pad // tk),
        in_specs=[
            pl.BlockSpec((tm, tk), lambda i, k: (i, k)),          # A tile
            pl.BlockSpec((tk, out_pad), lambda i, k: (k, 0)),     # XW tile
            pl.BlockSpec((tm, 1), lambda i, k: (i, 0)),           # dinv rows
            pl.BlockSpec((1, out_pad), lambda i, k: (0, 0)),      # bias
        ],
        out_specs=pl.BlockSpec((tm, out_pad), lambda i, k: (i, 0)),
        scratch_shapes=scratch,
        compiler_params=pltpu.CompilerParams(
            dimension_semantics=("parallel", "arbitrary")),
    )(a_bf16, xw_bf16, dinv, b_pad)


def gcn_layer(a_bf16, dinv, x_pad, w_pad, b_pad, tm, tk, *, apply_relu,
              out_dtype):
    xw = _scaled_xw(x_pad, w_pad, dinv, tm)
    return _aggregate(a_bf16, xw, dinv, b_pad, tm, tk, apply_relu, out_dtype)


# --------------------------- graph glue -------------------------------------

def build_adj_and_dinv(edge_index, num_nodes, n_pad):
    """Un-normalized dense adjacency (with self loops), built directly in
    bf16 (exact while per-(dst,src) edge multiplicity < 257), plus D^{-1/2}
    computed straight from the edge list (no O(N^2) f32 intermediate)."""
    src = edge_index[0]
    dst = edge_index[1]
    loop = jnp.arange(num_nodes, dtype=edge_index.dtype)
    src = jnp.concatenate([src, loop])
    dst = jnp.concatenate([dst, loop])

    deg = jnp.zeros((n_pad,), jnp.float32).at[dst].add(1.0)
    dinv = jnp.where(deg > 0, jax.lax.rsqrt(deg), 0.0).reshape(n_pad, 1)

    ones = jnp.ones(src.shape, jnp.bfloat16)
    a = jnp.zeros((n_pad, n_pad), jnp.bfloat16).at[dst, src].add(ones)
    return a, dinv


def gcn_forward(x, edge_index, params):
    n, f = x.shape
    hidden = params["w1"].shape[1]
    classes = params["w2"].shape[1]

    n_pad, tm, tk = _tiles_for(n)
    f_pad = _round_up(f, LANE)
    h_pad = _round_up(hidden, LANE)
    c_pad = _round_up(classes, LANE)

    a_bf16, dinv = build_adj_and_dinv(edge_index, n, n_pad)

    # bf16 GEMM inputs (MXU-native); accumulation stays f32 inside the kernel.
    x_pad = jnp.zeros((n_pad, f_pad), jnp.bfloat16).at[:n, :f].set(
        x.astype(jnp.bfloat16))
    w1 = jnp.zeros((f_pad, h_pad), jnp.bfloat16).at[:f, :hidden].set(
        params["w1"].astype(jnp.bfloat16))
    b1 = jnp.zeros((1, h_pad), jnp.float32).at[:, :hidden].set(params["b1"])
    w2 = jnp.zeros((h_pad, c_pad), jnp.bfloat16).at[:hidden, :classes].set(
        params["w2"].astype(jnp.bfloat16))
    b2 = jnp.zeros((1, c_pad), jnp.float32).at[:, :classes].set(params["b2"])

    h = gcn_layer(a_bf16, dinv, x_pad, w1, b1, tm, tk,
                  apply_relu=True, out_dtype=jnp.bfloat16)
    # F.dropout(p=0.5, training=False) is the identity at inference time.
    out = gcn_layer(a_bf16, dinv, h, w2, b2, tm, tk,
                    apply_relu=False, out_dtype=jnp.float32)
    return out[:n, :classes]


# --------------------------- reference & params ------------------------------

def _reference_forward(x, edge_index, params):
    """Pure-JAX f32 reference for a tolerance check."""
    n = x.shape[0]
    src, dst = edge_index[0], edge_index[1]
    loop = jnp.arange(n, dtype=edge_index.dtype)
    src = jnp.concatenate([src, loop])
    dst = jnp.concatenate([dst, loop])
    a = jnp.zeros((n, n), jnp.float32).at[dst, src].add(1.0)
    deg = a.sum(axis=1)
    dinv = jnp.where(deg > 0, jax.lax.rsqrt(deg), 0.0)
    a_hat = dinv[:, None] * a * dinv[None, :]
    h = jnp.maximum(a_hat @ (x @ params["w1"]) + params["b1"], 0.0)
    return a_hat @ (h @ params["w2"]) + params["b2"]


def init_params(key, num_features, hidden_channels, num_classes):
    k1, k2 = jax.random.split(key)

    # PyG GCNConv stores lin.weight as [out, in]; keep the transposed [in, out]
    # so the kernel computes x @ w (== x @ W^T).  Glorot-uniform, zero bias.
    def glorot(k, fan_in, fan_out):
        limit = (6.0 / (fan_in + fan_out)) ** 0.5
        return jax.random.uniform(k, (fan_in, fan_out), jnp.float32, -limit, limit)

    return {
        "w1": glorot(k1, num_features, hidden_channels),
        "b1": jnp.zeros((1, hidden_channels), jnp.float32),
        "w2": glorot(k2, hidden_channels, num_classes),
        "b2": jnp.zeros((1, num_classes), jnp.float32),
    }


if __name__ == "__main__":
    # Small synthetic stand-in for Reddit2 (real dataset: 602 features,
    # 41 classes, ~233k nodes -- too large for a dense-adjacency demo).
    NUM_NODES = 256
    NUM_FEATURES = 64
    HIDDEN_CHANNELS = 32
    NUM_CLASSES = 16
    NUM_EDGES = 1024

    key = jax.random.PRNGKey(0)
    kx, ke, kp = jax.random.split(key, 3)

    x = jax.random.normal(kx, (NUM_NODES, NUM_FEATURES), jnp.float32)
    edge_index = jax.random.randint(ke, (2, NUM_EDGES), 0, NUM_NODES, jnp.int32)
    params = init_params(kp, NUM_FEATURES, HIDDEN_CHANNELS, NUM_CLASSES)

    out = jax.jit(gcn_forward)(x, edge_index, params)
    jax.block_until_ready(out)

    assert out.shape == (NUM_NODES, NUM_CLASSES)
    assert out.dtype == jnp.float32
    assert bool(jnp.isfinite(out).all())

    ref = _reference_forward(x, edge_index, params)
    err = float(jnp.max(jnp.abs(out - ref)))
    assert err < 0.1, f"max abs diff vs f32 reference too large: {err}"

    print("KERNEL_OK")
</pallas_src>

<mosaic_0001>
module attributes {stable_mosaic.version = 11 : i64} {
  func.func @_xw_kernel(%arg0: i32, %arg1: memref<128x128xbf16, #tpu.memory_space<vmem>>, %arg2: memref<128x128xbf16, #tpu.memory_space<vmem>>, %arg3: memref<128x1xf32, #tpu.memory_space<vmem>>, %arg4: memref<128x128xbf16, #tpu.memory_space<vmem>>) attributes {dimension_semantics = [#tpu.dimension_semantics<parallel>], iteration_bounds = array<i64: 2>, scalar_prefetch = 0 : i64, scratch_operands = 0 : i64, tpu.core_type = #tpu.core_type<tc>, window_params = [{transform_indices = @transform_0, window_bounds = array<i64: 128, 128>}, {pipeline_mode = #tpu.pipeline_mode<synchronous>, transform_indices = @transform_1, window_bounds = array<i64: 128, 128>}, {transform_indices = @transform_2, window_bounds = array<i64: 128, 1>}, {transform_indices = @transform_3, window_bounds = array<i64: 128, 128>}]} {
    %c0 = arith.constant 0 : index
    %c0_0 = arith.constant 0 : index
    %0 = vector.load %arg1[%c0, %c0_0] : memref<128x128xbf16, #tpu.memory_space<vmem>>, vector<128x128xbf16>
    %c0_1 = arith.constant 0 : index
    %c0_2 = arith.constant 0 : index
    %1 = vector.load %arg2[%c0_1, %c0_2] : memref<128x128xbf16, #tpu.memory_space<vmem>>, vector<128x128xbf16>
    %cst = arith.constant dense<0.000000e+00> : vector<128x128xf32>
    %2 = tpu.matmul %0, %1, %cst {dimension_numbers = #tpu.dot_dimension_numbers<[1], [0], [0], [1], [0, 0, 1, 1], [], []>} : vector<128x128xbf16>, vector<128x128xbf16>, vector<128x128xf32> -> vector<128x128xf32>
    %c0_3 = arith.constant 0 : index
    %c0_4 = arith.constant 0 : index
    %3 = vector.load %arg3[%c0_3, %c0_4] : memref<128x1xf32, #tpu.memory_space<vmem>>, vector<128x1xf32>
    %4 = vector.broadcast %3 : vector<128x1xf32> to vector<128x128xf32>
    %5 = arith.mulf %2, %4 : vector<128x128xf32>
    %6 = arith.truncf %5 : vector<128x128xf32> to vector<128x128xbf16>
    %c0_5 = arith.constant 0 : index
    %c0_6 = arith.constant 0 : index
    %7 = vector.load %arg4[%c0_5, %c0_6] : memref<128x128xbf16, #tpu.memory_space<vmem>>, vector<128x128xbf16>
    tpu.vector_store %arg4[%c0_5, %c0_6], %6 {strides = array<i32>} : memref<128x128xbf16, #tpu.memory_space<vmem>>, vector<128x128xbf16>,
    return
  }
  func.func @transform_0(%arg0: i32) -> (i32, i32) {
    %c0_i32 = arith.constant 0 : i32
    %c0_i32_0 = arith.constant 0 : i32
    return %arg0, %c0_i32 : i32, i32
  }
  func.func @transform_1(%arg0: i32) -> (i32, i32) {
    %c0_i32 = arith.constant 0 : i32
    %c0_i32_0 = arith.constant 0 : i32
    %c0_i32_1 = arith.constant 0 : i32
    return %c0_i32, %c0_i32_0 : i32, i32
  }
  func.func @transform_2(%arg0: i32) -> (i32, i32) {
    %c0_i32 = arith.constant 0 : i32
    %c0_i32_0 = arith.constant 0 : i32
    return %arg0, %c0_i32 : i32, i32
  }
  func.func @transform_3(%arg0: i32) -> (i32, i32) {
    %c0_i32 = arith.constant 0 : i32
    %c0_i32_0 = arith.constant 0 : i32
    return %arg0, %c0_i32 : i32, i32
  }
}

module attributes {stable_mosaic.version = 11 : i64} {
  func.func @_agg_kernel(%arg0: i32, %arg1: i32, %arg2: memref<128x256xbf16, #tpu.memory_space<vmem>>, %arg3: memref<256x128xbf16, #tpu.memory_space<vmem>>, %arg4: memref<128x1xf32, #tpu.memory_space<vmem>>, %arg5: memref<1x128xf32, #tpu.memory_space<vmem>>, %arg6: memref<128x128xbf16, #tpu.memory_space<vmem>>, %arg7: memref<128x128xf32, #tpu.memory_space<vmem>>) attributes {dimension_semantics = [#tpu.dimension_semantics<parallel>, #tpu.dimension_semantics<arbitrary>], iteration_bounds = array<i64: 2, 1>, scalar_prefetch = 0 : i64, scratch_operands = 1 : i64, tpu.core_type = #tpu.core_type<tc>, window_params = [{transform_indices = @transform_0, window_bounds = array<i64: 128, 256>}, {transform_indices = @transform_1, window_bounds = array<i64: 256, 128>}, {transform_indices = @transform_2, window_bounds = array<i64: 128, 1>}, {pipeline_mode = #tpu.pipeline_mode<synchronous>, transform_indices = @transform_3, window_bounds = array<i64: 1, 128>}, {transform_indices = @transform_4, window_bounds = array<i64: 128, 128>}]} {
    %c0_i32 = arith.constant 0 : i32
    %0 = arith.cmpi eq, %arg1, %c0_i32 : i32
    %1 = arith.extui %0 : i1 to i32
    %c0_i32_0 = arith.constant 0 : i32
    %2 = arith.cmpi ne, %1, %c0_i32_0 : i32
    scf.if %2 {
      %cst_10 = arith.constant 0.000000e+00 : f32
      %12 = vector.broadcast %cst_10 : f32 to vector<128x128xf32>
      %c0_11 = arith.constant 0 : index
      %c0_12 = arith.constant 0 : index
      %13 = vector.load %arg7[%c0_11, %c0_12] : memref<128x128xf32, #tpu.memory_space<vmem>>, vector<128x128xf32>
      tpu.vector_store %arg7[%c0_11, %c0_12], %12 {strides = array<i32>} : memref<128x128xf32, #tpu.memory_space<vmem>>, vector<128x128xf32>,
    } else {
    }
    %c0 = arith.constant 0 : index
    %c0_1 = arith.constant 0 : index
    %3 = vector.load %arg7[%c0, %c0_1] : memref<128x128xf32, #tpu.memory_space<vmem>>, vector<128x128xf32>
    %c0_2 = arith.constant 0 : index
    %c0_3 = arith.constant 0 : index
    %4 = vector.load %arg2[%c0_2, %c0_3] : memref<128x256xbf16, #tpu.memory_space<vmem>>, vector<128x256xbf16>
    %c0_4 = arith.constant 0 : index
    %c0_5 = arith.constant 0 : index
    %5 = vector.load %arg3[%c0_4, %c0_5] : memref<256x128xbf16, #tpu.memory_space<vmem>>, vector<256x128xbf16>
    %cst = arith.constant dense<0.000000e+00> : vector<128x128xf32>
    %6 = tpu.matmul %4, %5, %cst {dimension_numbers = #tpu.dot_dimension_numbers<[1], [0], [0], [1], [0, 0, 1, 1], [], []>} : vector<128x256xbf16>, vector<256x128xbf16>, vector<128x128xf32> -> vector<128x128xf32>
    %7 = arith.addf %3, %6 : vector<128x128xf32>
    %c0_6 = arith.constant 0 : index
    %c0_7 = arith.constant 0 : index
    %8 = vector.load %arg7[%c0_6, %c0_7] : memref<128x128xf32, #tpu.memory_space<vmem>>, vector<128x128xf32>
    tpu.vector_store %arg7[%c0_6, %c0_7], %7 {strides = array<i32>} : memref<128x128xf32, #tpu.memory_space<vmem>>, vector<128x128xf32>,
    %c0_i32_8 = arith.constant 0 : i32
    %9 = arith.cmpi eq, %arg1, %c0_i32_8 : i32
    %10 = arith.extui %9 : i1 to i32
    %c0_i32_9 = arith.constant 0 : i32
    %11 = arith.cmpi ne, %10, %c0_i32_9 : i32
    scf.if %11 {
      %c0_10 = arith.constant 0 : index
      %c0_11 = arith.constant 0 : index
      %12 = vector.load %arg7[%c0_10, %c0_11] : memref<128x128xf32, #tpu.memory_space<vmem>>, vector<128x128xf32>
      %c0_12 = arith.constant 0 : index
      %c0_13 = arith.constant 0 : index
      %13 = vector.load %arg4[%c0_12, %c0_13] : memref<128x1xf32, #tpu.memory_space<vmem>>, vector<128x1xf32>
      %14 = vector.broadcast %13 : vector<128x1xf32> to vector<128x128xf32>
      %15 = arith.mulf %12, %14 : vector<128x128xf32>
      %c0_14 = arith.constant 0 : index
      %c0_15 = arith.constant 0 : index
      %16 = vector.load %arg5[%c0_14, %c0_15] : memref<1x128xf32, #tpu.memory_space<vmem>>, vector<1x128xf32>
      %17 = vector.broadcast %16 : vector<1x128xf32> to vector<128x128xf32>
      %18 = arith.addf %15, %17 : vector<128x128xf32>
      %cst_16 = arith.constant 0.000000e+00 : f32
      %19 = vector.broadcast %cst_16 : f32 to vector<128x128xf32>
      %20 = arith.maximumf %18, %19 : vector<128x128xf32>
      %21 = arith.truncf %20 : vector<128x128xf32> to vector<128x128xbf16>
      %c0_17 = arith.constant 0 : index
      %c0_18 = arith.constant 0 : index
      %22 = vector.load %arg6[%c0_17, %c0_18] : memref<128x128xbf16, #tpu.memory_space<vmem>>, vector<128x128xbf16>
      tpu.vector_store %arg6[%c0_17, %c0_18], %21 {strides = array<i32>} : memref<128x128xbf16, #tpu.memory_space<vmem>>, vector<128x128xbf16>,
    } else {
    }
    return
  }
  func.func @transform_0(%arg0: i32, %arg1: i32) -> (i32, i32) {
    %c0_i32 = arith.constant 0 : i32
    return %arg0, %arg1 : i32, i32
  }
  func.func @transform_1(%arg0: i32, %arg1: i32) -> (i32, i32) {
    %c0_i32 = arith.constant 0 : i32
    %c0_i32_0 = arith.constant 0 : i32
    return %arg1, %c0_i32 : i32, i32
  }
  func.func @transform_2(%arg0: i32, %arg1: i32) -> (i32, i32) {
    %c0_i32 = arith.constant 0 : i32
    %c0_i32_0 = arith.constant 0 : i32
    return %arg0, %c0_i32 : i32, i32
  }
  func.func @transform_3(%arg0: i32, %arg1: i32) -> (i32, i32) {
    %c0_i32 = arith.constant 0 : i32
    %c0_i32_0 = arith.constant 0 : i32
    %c0_i32_1 = arith.constant 0 : i32
    return %c0_i32, %c0_i32_0 : i32, i32
  }
  func.func @transform_4(%arg0: i32, %arg1: i32) -> (i32, i32) {
    %c0_i32 = arith.constant 0 : i32
    %c0_i32_0 = arith.constant 0 : i32
    return %arg0, %c0_i32 : i32, i32
  }
}

module attributes {stable_mosaic.version = 11 : i64} {
  func.func @_agg_kernel(%arg0: i32, %arg1: i32, %arg2: memref<128x256xbf16, #tpu.memory_space<vmem>>, %arg3: memref<256x128xbf16, #tpu.memory_space<vmem>>, %arg4: memref<128x1xf32, #tpu.memory_space<vmem>>, %arg5: memref<1x128xf32, #tpu.memory_space<vmem>>, %arg6: memref<128x128xf32, #tpu.memory_space<vmem>>) attributes {dimension_semantics = [#tpu.dimension_semantics<parallel>, #tpu.dimension_semantics<arbitrary>], iteration_bounds = array<i64: 2, 1>, scalar_prefetch = 0 : i64, scratch_operands = 0 : i64, tpu.core_type = #tpu.core_type<tc>, window_params = [{transform_indices = @transform_0, window_bounds = array<i64: 128, 256>}, {transform_indices = @transform_1, window_bounds = array<i64: 256, 128>}, {transform_indices = @transform_2, window_bounds = array<i64: 128, 1>}, {pipeline_mode = #tpu.pipeline_mode<synchronous>, transform_indices = @transform_3, window_bounds = array<i64: 1, 128>}, {transform_indices = @transform_4, window_bounds = array<i64: 128, 128>}]} {
    %c0_i32 = arith.constant 0 : i32
    %0 = arith.cmpi eq, %arg1, %c0_i32 : i32
    %1 = arith.extui %0 : i1 to i32
    %c0_i32_0 = arith.constant 0 : i32
    %2 = arith.cmpi ne, %1, %c0_i32_0 : i32
    scf.if %2 {
      %cst_10 = arith.constant 0.000000e+00 : f32
      %12 = vector.broadcast %cst_10 : f32 to vector<128x128xf32>
      %c0_11 = arith.constant 0 : index
      %c0_12 = arith.constant 0 : index
      %13 = vector.load %arg6[%c0_11, %c0_12] : memref<128x128xf32, #tpu.memory_space<vmem>>, vector<128x128xf32>
      tpu.vector_store %arg6[%c0_11, %c0_12], %12 {strides = array<i32>} : memref<128x128xf32, #tpu.memory_space<vmem>>, vector<128x128xf32>,
    } else {
    }
    %c0 = arith.constant 0 : index
    %c0_1 = arith.constant 0 : index
    %3 = vector.load %arg6[%c0, %c0_1] : memref<128x128xf32, #tpu.memory_space<vmem>>, vector<128x128xf32>
    %c0_2 = arith.constant 0 : index
    %c0_3 = arith.constant 0 : index
    %4 = vector.load %arg2[%c0_2, %c0_3] : memref<128x256xbf16, #tpu.memory_space<vmem>>, vector<128x256xbf16>
    %c0_4 = arith.constant 0 : index
    %c0_5 = arith.constant 0 : index
    %5 = vector.load %arg3[%c0_4, %c0_5] : memref<256x128xbf16, #tpu.memory_space<vmem>>, vector<256x128xbf16>
    %cst = arith.constant dense<0.000000e+00> : vector<128x128xf32>
    %6 = tpu.matmul %4, %5, %cst {dimension_numbers = #tpu.dot_dimension_numbers<[1], [0], [0], [1], [0, 0, 1, 1], [], []>} : vector<128x256xbf16>, vector<256x128xbf16>, vector<128x128xf32> -> vector<128x128xf32>
    %7 = arith.addf %3, %6 : vector<128x128xf32>
    %c0_6 = arith.constant 0 : index
    %c0_7 = arith.constant 0 : index
    %8 = vector.load %arg6[%c0_6, %c0_7] : memref<128x128xf32, #tpu.memory_space<vmem>>, vector<128x128xf32>
    tpu.vector_store %arg6[%c0_6, %c0_7], %7 {strides = array<i32>} : memref<128x128xf32, #tpu.memory_space<vmem>>, vector<128x128xf32>,
    %c0_i32_8 = arith.constant 0 : i32
    %9 = arith.cmpi eq, %arg1, %c0_i32_8 : i32
    %10 = arith.extui %9 : i1 to i32
    %c0_i32_9 = arith.constant 0 : i32
    %11 = arith.cmpi ne, %10, %c0_i32_9 : i32
    scf.if %11 {
      %c0_10 = arith.constant 0 : index
      %c0_11 = arith.constant 0 : index
      %12 = vector.load %arg6[%c0_10, %c0_11] : memref<128x128xf32, #tpu.memory_space<vmem>>, vector<128x128xf32>
      %c0_12 = arith.constant 0 : index
      %c0_13 = arith.constant 0 : index
      %13 = vector.load %arg4[%c0_12, %c0_13] : memref<128x1xf32, #tpu.memory_space<vmem>>, vector<128x1xf32>
      %14 = vector.broadcast %13 : vector<128x1xf32> to vector<128x128xf32>
      %15 = arith.mulf %12, %14 : vector<128x128xf32>
      %c0_14 = arith.constant 0 : index
      %c0_15 = arith.constant 0 : index
      %16 = vector.load %arg5[%c0_14, %c0_15] : memref<1x128xf32, #tpu.memory_space<vmem>>, vector<1x128xf32>
      %17 = vector.broadcast %16 : vector<1x128xf32> to vector<128x128xf32>
      %18 = arith.addf %15, %17 : vector<128x128xf32>
      %c0_16 = arith.constant 0 : index
      %c0_17 = arith.constant 0 : index
      %19 = vector.load %arg6[%c0_16, %c0_17] : memref<128x128xf32, #tpu.memory_space<vmem>>, vector<128x128xf32>
      tpu.vector_store %arg6[%c0_16, %c0_17], %18 {strides = array<i32>} : memref<128x128xf32, #tpu.memory_space<vmem>>, vector<128x128xf32>,
    } else {
    }
    return
  }
  func.func @transform_0(%arg0: i32, %arg1: i32) -> (i32, i32) {
    %c0_i32 = arith.constant 0 : i32
    return %arg0, %arg1 : i32, i32
  }
  func.func @transform_1(%arg0: i32, %arg1: i32) -> (i32, i32) {
    %c0_i32 = arith.constant 0 : i32
    %c0_i32_0 = arith.constant 0 : i32
    return %arg1, %c0_i32 : i32, i32
  }
  func.func @transform_2(%arg0: i32, %arg1: i32) -> (i32, i32) {
    %c0_i32 = arith.constant 0 : i32
    %c0_i32_0 = arith.constant 0 : i32
    return %arg0, %c0_i32 : i32, i32
  }
  func.func @transform_3(%arg0: i32, %arg1: i32) -> (i32, i32) {
    %c0_i32 = arith.constant 0 : i32
    %c0_i32_0 = arith.constant 0 : i32
    %c0_i32_1 = arith.constant 0 : i32
    return %c0_i32, %c0_i32_0 : i32, i32
  }
  func.func @transform_4(%arg0: i32, %arg1: i32) -> (i32, i32) {
    %c0_i32 = arith.constant 0 : i32
    %c0_i32_0 = arith.constant 0 : i32
    return %arg0, %c0_i32 : i32, i32
  }
}

</mosaic_0001>

<llo_original>
// kernel: gcn_forward.4
$region0: #{gcn_forward.4}
  #allocation0 [shape = 'u32[]', space=smem, size = 0x4, offset = 0x4, fixed_abs, tag = 'smem constant byte address 0x4 - core index']
  #allocation1 [shape = 'u32[72,128]{1,0:T(1,128)}', space=vmem, size = 0x9000, scoped, tag = 'internal scratch']
  %s0 = inlined_call_operand.vmem [shape: bf16[256,128], index: 0, kind: input, shape index: {}]
  %s1 = inlined_call_operand.vmem [shape: bf16[128,128], index: 1, kind: input, shape index: {}]
  %s2 = inlined_call_operand.vmem [shape: f32[256,1], index: 2, kind: input, shape index: {}]
  %s3 = inlined_call_operand.vmem [shape: bf16[256,128], index: 3, kind: output, shape index: {}]
  %s4 = sld [smem:[#allocation0]]
  $region45: #{gcn_forward.4} parent=0
    _
  %s6 = ssub.s32 1, %s4
  %s7 = scalar_select 0, %s6, %s4
  loop: start=0, step=1, limit=4
  $region2: #{gcn_forward.4} parent=0 // loop_pre_header
    _
  $region3: #{gcn_forward.4} parent=0 // loop_header
    %s9 = sphi 0, %s13
    %p10 = scmp.ge.s32.totalorder %s9, 4
    %s19 = sphi 0, %s21
    %s22 = sphi 0, %s19
    %s23 = sphi 0, %s22
    %s39 = sphi 0, %s23
    %s43 = sphi 0, %s43
    %s45 = sphi 0, %s43
    %s46 = sphi 0, %s45
    %s60 = sphi 0, %s46
    %s66 = sphi 0, %s68
    %s69 = sphi 0, %s66
    %s70 = sphi 0, %s69
    %s86 = sphi 0, %s70
    %s92 = sphi 0, %s94
    %s95 = sphi 0, %s92
    %s96 = sphi 0, %s95
    %s112 = sphi 0, %s96
  $region4: #{gcn_forward.4} parent=0 // loop_header_branch
    %12 = sbr.rel (%p10) target = $region8
  $region5: #{gcn_forward.4} parent=0 // loop_body
    %s14 = ssub.s32 %s9, 1
    %s15 = ssub.s32 %s9, 2
    %s16 = sadd.s32 %s9, 1
    %s17 = ssub.s32 %s9, %s16
    %p18 = scmp.eq.s32.totalorder %s17, 0
    %s20 = sadd.s32 %s19, 1
    %s21 = scalar_select %p18, %s19, %s20
    %p24 = pneg %p18
    %p25 = scmp.eq.s32.totalorder %s9, 1
    %p26 = por %p24, %p25
    %p27 = scmp.ne.s32.totalorder %s19, %s22
    %p28 = scmp.eq.s32.totalorder %s9, 0
    %p29 = por %p27, %p28
    %p30 = scmp.ne.s32.totalorder %s19, %s22
    %p31 = scmp.eq.s32.totalorder %s14, 1
    %p32 = por %p30, %p31
    %p33 = scmp.ne.s32.totalorder %s22, %s23
    %p34 = scmp.eq.s32.totalorder %s14, 0
    %p35 = por %p33, %p34
    %p36 = scmp.ne.s32.totalorder %s22, %s23
    %p37 = scmp.eq.s32.totalorder %s15, 1
    %p38 = por %p36, %p37
    %p40 = scmp.ne.s32.totalorder %s23, %s39
    %p41 = scmp.eq.s32.totalorder %s15, 0
    %p42 = por %p40, %p41
    %s44 = sadd.s32 %s43, 1
    %p47 = scmp.eq.s32.totalorder %s9, 1
    %p48 = scmp.ne.s32.totalorder %s43, %s45
    %p49 = scmp.eq.s32.totalorder %s9, 0
    %p50 = por %p48, %p49
    %p51 = scmp.ne.s32.totalorder %s43, %s45
    %p52 = scmp.eq.s32.totalorder %s14, 1
    %p53 = por %p51, %p52
    %p54 = scmp.ne.s32.totalorder %s45, %s46
    %p55 = scmp.eq.s32.totalorder %s14, 0
    %p56 = por %p54, %p55
    %p57 = scmp.ne.s32.totalorder %s45, %s46
    %p58 = scmp.eq.s32.totalorder %s15, 1
    %p59 = por %p57, %p58
    %p61 = scmp.ne.s32.totalorder %s46, %s60
    %p62 = scmp.eq.s32.totalorder %s15, 0
    %p63 = por %p61, %p62
    %s64 = ssub.s32 %s9, %s16
    %p65 = scmp.eq.s32.totalorder %s64, 0
    %s67 = sadd.s32 %s66, 1
    %s68 = scalar_select %p65, %s66, %s67
    %p71 = pneg %p65
    %p72 = scmp.eq.s32.totalorder %s9, 1
    %p73 = por %p71, %p72
    %p74 = scmp.ne.s32.totalorder %s66, %s69
    %p75 = scmp.eq.s32.totalorder %s9, 0
    %p76 = por %p74, %p75
    %p77 = scmp.ne.s32.totalorder %s66, %s69
    %p78 = scmp.eq.s32.totalorder %s14, 1
    %p79 = por %p77, %p78
    %p80 = scmp.ne.s32.totalorder %s69, %s70
    %p81 = scmp.eq.s32.totalorder %s14, 0
    %p82 = por %p80, %p81
    %p83 = scmp.ne.s32.totalorder %s69, %s70
    %p84 = scmp.eq.s32.totalorder %s15, 1
    %p85 = por %p83, %p84
    %p87 = scmp.ne.s32.totalorder %s70, %s86
    %p88 = scmp.eq.s32.totalorder %s15, 0
    %p89 = por %p87, %p88
    %s90 = ssub.s32 %s9, %s16
    %p91 = scmp.eq.s32.totalorder %s90, 0
    %s93 = sadd.s32 %s92, 1
    %s94 = scalar_select %p91, %s92, %s93
    %p97 = pneg %p91
    %p98 = scmp.eq.s32.totalorder %s9, 1
    %p99 = por %p97, %p98
    %p100 = scmp.ne.s32.totalorder %s92, %s95
    %p101 = scmp.eq.s32.totalorder %s9, 0
    %p102 = por %p100, %p101
    %p103 = scmp.ne.s32.totalorder %s92, %s95
    %p104 = scmp.eq.s32.totalorder %s14, 1
    %p105 = por %p103, %p104
    %p106 = scmp.ne.s32.totalorder %s95, %s96
    %p107 = scmp.eq.s32.totalorder %s14, 0
    %p108 = por %p106, %p107
    %p109 = scmp.ne.s32.totalorder %s95, %s96
    %p110 = scmp.eq.s32.totalorder %s15, 1
    %p111 = por %p109, %p110
    %p113 = scmp.ne.s32.totalorder %s96, %s112
    %p114 = scmp.eq.s32.totalorder %s15, 0
    %p115 = por %p113, %p114
    %p116 = scmp.le.s32.totalorder 1, %s9
    %p117 = scmp.lt.s32.totalorder %s9, 3
    %p118 = pnand %p116, %p117
    %p119 = pneg %p118
    // Predicated region
    $region9: #{gcn_forward.4} parent=5 // pred_check
      _
    $region10: #{gcn_forward.4} parent=5 // pred_check_branch
      %121 = sbr.rel (%p118) target = $region12
    $region11: #{gcn_forward.4} parent=5 // pred_region
      %s122 = ssub.s32 %s9, 1
      // Predicated region
      $region13: #{gcn_forward.4} parent=11 // pred_check
        %p123 = pneg %p56
      $region14: #{gcn_forward.4} parent=11 // pred_check_branch
        %125 = sbr.rel (%p123) target = $region16
      $region15: #{gcn_forward.4} parent=11 // pred_region
        _
      $region16: #{gcn_forward.4} parent=11 // pred_fallthru
        _
    $region12: #{gcn_forward.4} parent=5 // pred_fallthru
      _
    %p126 = scmp.lt.s32.totalorder %s9, 2
    // Predicated region
    $region17: #{gcn_forward.4} parent=5 // pred_check
      %p127 = pneg %p126
    $region18: #{gcn_forward.4} parent=5 // pred_check_branch
      %129 = sbr.rel (%p127) target = $region20
    $region19: #{gcn_forward.4} parent=5 // pred_region
      // Predicated region
      $region21: #{gcn_forward.4} parent=19 // pred_check
        %p130 = pneg %p29
      $region22: #{gcn_forward.4} parent=19 // pred_check_branch
        %132 = sbr.rel (%p130) target = $region24
      $region23: #{gcn_forward.4} parent=19 // pred_region
        %s133 = smul.u32 16, %s9
        %p134 = scmp.lt.s32.totalorder %s133, 31
        %s135 = scalar_select %p134, %s133, 31
        %s136 = smul.addr %s135, 4
        %s137 = scalar_lea.vmem %s0, %s136
        %s138 = smul.u32 16, %s9
      $region24: #{gcn_forward.4} parent=19 // pred_fallthru
        _
      // Predicated region
      $region25: #{gcn_forward.4} parent=19 // pred_check
        %p139 = pneg %p76
      $region26: #{gcn_forward.4} parent=19 // pred_check_branch
        %141 = sbr.rel (%p139) target = $region28
      $region27: #{gcn_forward.4} parent=19 // pred_region
        %s142 = smul.u32 16, %s9
        %p143 = scmp.lt.s32.totalorder %s142, 31
        %s144 = scalar_select %p143, %s142, 31
        %s145 = smul.addr %s144, 8
        %s146 = scalar_lea.vmem %s2, %s145
        %s147 = smul.u32 16, %s9
      $region28: #{gcn_forward.4} parent=19 // pred_fallthru
        _
    $region20: #{gcn_forward.4} parent=5 // pred_fallthru
      _
    %p148 = scmp.le.s32.totalorder 1, %s9
    %p149 = scmp.lt.s32.totalorder %s9, 3
    %p150 = pnand %p148, %p149
    %p151 = pneg %p150
    // Predicated region
    $region29: #{gcn_forward.4} parent=5 // pred_check
      _
    $region30: #{gcn_forward.4} parent=5 // pred_check_branch
      %153 = sbr.rel (%p150) target = $region32
    $region31: #{gcn_forward.4} parent=5 // pred_region
      %s154 = ssub.s32 %s9, 1
      %s155 = smul.u32 16, %s14
      %p156 = scmp.lt.s32.totalorder %s155, 31
      %s157 = scalar_select %p156, %s155, 31
      %s158 = smul.addr %s157, 4
      %s159 = scalar_lea.vmem %s0, %s158
      %p160 = pneg %p35
      %p161 = pneg %p32
      %p162 = pneg %p56
      %p163 = pneg %p53
      %s164 = smul.u32 16, %s14
      %p165 = scmp.lt.s32.totalorder %s164, 31
      %s166 = scalar_select %p165, %s164, 31
      %s167 = smul.addr %s166, 8
      %s168 = scalar_lea.vmem %s2, %s167
      %p169 = pneg %p82
      %p170 = pneg %p79
      %p171 = pneg %p108
      %p172 = pneg %p105
      %s173 = smul.u32 16, %s14
      %p174 = scmp.lt.s32.totalorder %s173, 31
      %s175 = scalar_select %p174, %s173, 31
      %s176 = smul.addr %s175, 4
      %s177 = scalar_lea.vmem %s3, %s176
      %s178 = smul.u32 16, %s14
      %p179 = scmp.lt.s32.totalorder %s178, 31
      %s180 = scalar_select %p179, %s178, 31
      %s181 = smul.addr %s180, 4
      %s182 = scalar_lea.vmem %s0, %s181
      %s183 = smul.u32 16, %s14
      %s184 = smul.u32 16, %s14
      %p185 = scmp.lt.s32.totalorder %s184, 31
      %s186 = scalar_select %p185, %s184, 31
      %s187 = smul.addr %s186, 8
      %s188 = scalar_lea.vmem %s2, %s187
      %s189 = smul.u32 16, %s14
      %s190 = smul.u32 16, %s14
      %p191 = scmp.lt.s32.totalorder %s190, 31
      %s192 = scalar_select %p191, %s190, 31
      %s193 = smul.addr %s192, 4
      %s194 = scalar_lea.vmem %s3, %s193
      %s195 = smul.u32 16, %s14
      %v196 = vld [vmem:[%s182] sm:$0xf]
      %v197 = vld [vmem:[%s182 + $0x4] sm:$0xf]
      %v198 = vld [vmem:[%s182 + $0x8] sm:$0xf]
      %v199 = vld [vmem:[%s182 + $0xc] sm:$0xf]
      %v200 = vld [vmem:[%s182 + $0x10] sm:$0xf]
      %v201 = vld [vmem:[%s182 + $0x14] sm:$0xf]
      %v202 = vld [vmem:[%s182 + $0x18] sm:$0xf]
      %v203 = vld [vmem:[%s182 + $0x1c] sm:$0xf]
      %v204 = vld [vmem:[%s182 + $0x20] sm:$0xf]
      %v205 = vld [vmem:[%s182 + $0x24] sm:$0xf]
      %v206 = vld [vmem:[%s182 + $0x28] sm:$0xf]
      %v207 = vld [vmem:[%s182 + $0x2c] sm:$0xf]
      %v208 = vld [vmem:[%s182 + $0x30] sm:$0xf]
      %v209 = vld [vmem:[%s182 + $0x34] sm:$0xf]
      %v210 = vld [vmem:[%s182 + $0x38] sm:$0xf]
      %v211 = vld [vmem:[%s182 + $0x3c] sm:$0xf]
      %v212 = vld [vmem:[%s1] sm:$0xf]
      %v213 = vld [vmem:[%s1 + $0x4] sm:$0xf]
      %v214 = vld [vmem:[%s1 + $0x8] sm:$0xf]
      %v215 = vld [vmem:[%s1 + $0xc] sm:$0xf]
      %v216 = vld [vmem:[%s1 + $0x10] sm:$0xf]
      %v217 = vld [vmem:[%s1 + $0x14] sm:$0xf]
      %v218 = vld [vmem:[%s1 + $0x18] sm:$0xf]
      %v219 = vld [vmem:[%s1 + $0x1c] sm:$0xf]
      %v220 = vld [vmem:[%s1 + $0x20] sm:$0xf]
      %v221 = vld [vmem:[%s1 + $0x24] sm:$0xf]
      %v222 = vld [vmem:[%s1 + $0x28] sm:$0xf]
      %v223 = vld [vmem:[%s1 + $0x2c] sm:$0xf]
      %v224 = vld [vmem:[%s1 + $0x30] sm:$0xf]
      %v225 = vld [vmem:[%s1 + $0x34] sm:$0xf]
      %v226 = vld [vmem:[%s1 + $0x38] sm:$0xf]
      %v227 = vld [vmem:[%s1 + $0x3c] sm:$0xf]
      %v244 = vunpack.c.l.b16 %v196
      %v245 = vunpack.c.l.b16 %v197
      %v246 = vunpack.c.l.b16 %v198
      %v247 = vunpack.c.l.b16 %v199
      %v248 = vunpack.c.l.b16 %v200
      %v249 = vunpack.c.l.b16 %v201
      %v250 = vunpack.c.l.b16 %v202
      %v251 = vunpack.c.l.b16 %v203
      %v252 = vunpack.c.l.b16 %v204
      %v253 = vunpack.c.l.b16 %v205
      %v254 = vunpack.c.l.b16 %v206
      %v255 = vunpack.c.l.b16 %v207
      %v256 = vunpack.c.l.b16 %v208
      %v257 = vunpack.c.l.b16 %v209
      %v258 = vunpack.c.l.b16 %v210
      %v259 = vunpack.c.l.b16 %v211
      %v260 = vpack.c.b16 %v245, %v244
      %v261 = vpack.c.b16 %v247, %v246
      %v262 = vpack.c.b16 %v249, %v248
      %v263 = vpack.c.b16 %v251, %v250
      %v264 = vpack.c.b16 %v253, %v252
      %v265 = vpack.c.b16 %v255, %v254
      %v266 = vpack.c.b16 %v257, %v256
      %v267 = vpack.c.b16 %v259, %v258
      %v292 = vunpack.c.l.b16 %v212
      %v293 = vunpack.c.l.b16 %v213
      %v294 = vunpack.c.l.b16 %v214
      %v295 = vunpack.c.l.b16 %v215
      %v296 = vunpack.c.l.b16 %v216
      %v297 = vunpack.c.l.b16 %v217
      %v298 = vunpack.c.l.b16 %v218
      %v299 = vunpack.c.l.b16 %v219
      %v300 = vunpack.c.l.b16 %v220
      %v301 = vunpack.c.l.b16 %v221
      %v302 = vunpack.c.l.b16 %v222
      %v303 = vunpack.c.l.b16 %v223
      %v304 = vunpack.c.l.b16 %v224
      %v305 = vunpack.c.l.b16 %v225
      %v306 = vunpack.c.l.b16 %v226
      %v307 = vunpack.c.l.b16 %v227
      %v308 = vpack.c.b16 %v293, %v292
      %v309 = vpack.c.b16 %v295, %v294
      %v310 = vpack.c.b16 %v297, %v296
      %v311 = vpack.c.b16 %v299, %v298
      %v312 = vpack.c.b16 %v301, %v300
      %v313 = vpack.c.b16 %v303, %v302
      %v314 = vpack.c.b16 %v305, %v304
      %v315 = vpack.c.b16 %v307, %v306
      %324 = vmatpush.bf16.msra.mxu0 %v315
      %325 = vmatpush.bf16.msra.mxu0 %v314
      %326 = vmatpush.bf16.msra.mxu0 %v313
      %327 = vmatpush.bf16.msra.mxu0 %v312
      %328 = vmatpush.bf16.msra.mxu0 %v311
      %329 = vmatpush.bf16.msra.mxu0 %v310
      %330 = vmatpush.bf16.msra.mxu0 %v309
      %331 = vmatpush.bf16.msra.mxu0 %v308
      %332 = vmatmul.bf16.gmra.mxu0 %v260
      %v333 = vpop.f32.mrf.mxu0
      %v334 = vadd.f32 0.0, %v333
      %v335 = vpop.f32.mrf.mxu0
      %v336 = vadd.f32 0.0, %v335
      %337 = vmatmul.bf16.gmra.mxu0 %v261
      %v338 = vpop.f32.mrf.mxu0
      %v339 = vadd.f32 0.0, %v338
      %v340 = vpop.f32.mrf.mxu0
      %v341 = vadd.f32 0.0, %v340
      %342 = vmatmul.bf16.gmra.mxu0 %v262
      %v343 = vpop.f32.mrf.mxu0
      %v344 = vadd.f32 0.0, %v343
      %v345 = vpop.f32.mrf.mxu0
      %v346 = vadd.f32 0.0, %v345
      %347 = vmatmul.bf16.gmra.mxu0 %v263
      %v348 = vpop.f32.mrf.mxu0
      %v349 = vadd.f32 0.0, %v348
      %v350 = vpop.f32.mrf.mxu0
      %v351 = vadd.f32 0.0, %v350
      %352 = vmatmul.bf16.gmra.mxu0 %v264
      %v353 = vpop.f32.mrf.mxu0
      %v354 = vadd.f32 0.0, %v353
      %v355 = vpop.f32.mrf.mxu0
      %v356 = vadd.f32 0.0, %v355
      %357 = vmatmul.bf16.gmra.mxu0 %v265
      %v358 = vpop.f32.mrf.mxu0
      %v359 = vadd.f32 0.0, %v358
      %v360 = vpop.f32.mrf.mxu0
      %v361 = vadd.f32 0.0, %v360
      %362 = vmatmul.bf16.gmra.mxu0 %v266
      %v363 = vpop.f32.mrf.mxu0
      %v364 = vadd.f32 0.0, %v363
      %v365 = vpop.f32.mrf.mxu0
      %v366 = vadd.f32 0.0, %v365
      %367 = vmatmul.bf16.gmra.mxu0 %v267
      %v368 = vpop.f32.mrf.mxu0
      %v369 = vadd.f32 0.0, %v368
      %v370 = vpop.f32.mrf.mxu0
      %v371 = vadd.f32 0.0, %v370
      %372 = vdwg.mxu0
      %v373 = vld [vmem:[%s188] sm:$0xff]
      %v374 = vld [vmem:[%s188 + $0x8] sm:$0xff]
      %v375 = vld [vmem:[%s188 + $0x10] sm:$0xff]
      %v376 = vld [vmem:[%s188 + $0x18] sm:$0xff]
      %v377 = vld [vmem:[%s188 + $0x20] sm:$0xff]
      %v378 = vld [vmem:[%s188 + $0x28] sm:$0xff]
      %v379 = vld [vmem:[%s188 + $0x30] sm:$0xff]
      %v380 = vld [vmem:[%s188 + $0x38] sm:$0xff]
      %v381 = vld [vmem:[%s188 + $0x40] sm:$0xff]
      %v382 = vld [vmem:[%s188 + $0x48] sm:$0xff]
      %v383 = vld [vmem:[%s188 + $0x50] sm:$0xff]
      %v384 = vld [vmem:[%s188 + $0x58] sm:$0xff]
      %v385 = vld [vmem:[%s188 + $0x60] sm:$0xff]
      %v386 = vld [vmem:[%s188 + $0x68] sm:$0xff]
      %v387 = vld [vmem:[%s188 + $0x70] sm:$0xff]
      %v388 = vld [vmem:[%s188 + $0x78] sm:$0xff]
      %390 = vset.pattern.permute.xlu0 0
      %391 = vperm.xlu0 %390, %v373
      %v392 = vpop.permute.xlu0 %391
      %395 = vset.pattern.permute.xlu0 0
      %396 = vperm.xlu0 %395, %v374
      %v397 = vpop.permute.xlu0 %396
      %400 = vset.pattern.permute.xlu0 0
      %401 = vperm.xlu0 %400, %v375
      %v402 = vpop.permute.xlu0 %401
      %405 = vset.pattern.permute.xlu0 0
      %406 = vperm.xlu0 %405, %v376
      %v407 = vpop.permute.xlu0 %406
      %410 = vset.pattern.permute.xlu0 0
      %411 = vperm.xlu0 %410, %v377
      %v412 = vpop.permute.xlu0 %411
      %415 = vset.pattern.permute.xlu0 0
      %416 = vperm.xlu0 %415, %v378
      %v417 = vpop.permute.xlu0 %416
      %420 = vset.pattern.permute.xlu0 0
      %421 = vperm.xlu0 %420, %v379
      %v422 = vpop.permute.xlu0 %421
      %425 = vset.pattern.permute.xlu0 0
      %426 = vperm.xlu0 %425, %v380
      %v427 = vpop.permute.xlu0 %426
      %430 = vset.pattern.permute.xlu0 0
      %431 = vperm.xlu0 %430, %v381
      %v432 = vpop.permute.xlu0 %431
      %435 = vset.pattern.permute.xlu0 0
      %436 = vperm.xlu0 %435, %v382
      %v437 = vpop.permute.xlu0 %436
      %440 = vset.pattern.permute.xlu0 0
      %441 = vperm.xlu0 %440, %v383
      %v442 = vpop.permute.xlu0 %441
      %445 = vset.pattern.permute.xlu0 0
      %446 = vperm.xlu0 %445, %v384
      %v447 = vpop.permute.xlu0 %446
      %450 = vset.pattern.permute.xlu0 0
      %451 = vperm.xlu0 %450, %v385
      %v452 = vpop.permute.xlu0 %451
      %455 = vset.pattern.permute.xlu0 0
      %456 = vperm.xlu0 %455, %v386
      %v457 = vpop.permute.xlu0 %456
      %460 = vset.pattern.permute.xlu0 0
      %461 = vperm.xlu0 %460, %v387
      %v462 = vpop.permute.xlu0 %461
      %465 = vset.pattern.permute.xlu0 0
      %466 = vperm.xlu0 %465, %v388
      %v467 = vpop.permute.xlu0 %466
      %v469 = vmul.f32 %v334, %v392
      %v470 = vmul.f32 %v336, %v397
      %v471 = vmul.f32 %v339, %v402
      %v472 = vmul.f32 %v341, %v407
      %v473 = vmul.f32 %v344, %v412
      %v474 = vmul.f32 %v346, %v417
      %v475 = vmul.f32 %v349, %v422
      %v476 = vmul.f32 %v351, %v427
      %v477 = vmul.f32 %v354, %v432
      %v478 = vmul.f32 %v356, %v437
      %v479 = vmul.f32 %v359, %v442
      %v480 = vmul.f32 %v361, %v447
      %v481 = vmul.f32 %v364, %v452
      %v482 = vmul.f32 %v366, %v457
      %v483 = vmul.f32 %v369, %v462
      %v484 = vmul.f32 %v371, %v467
      %v485 = vpack.c.bf16 %v469, %v469
      %v486 = vpack.c.bf16 %v470, %v470
      %v487 = vpack.c.bf16 %v471, %v471
      %v488 = vpack.c.bf16 %v472, %v472
      %v489 = vpack.c.bf16 %v473, %v473
      %v490 = vpack.c.bf16 %v474, %v474
      %v491 = vpack.c.bf16 %v475, %v475
      %v492 = vpack.c.bf16 %v476, %v476
      %v493 = vpack.c.bf16 %v477, %v477
      %v494 = vpack.c.bf16 %v478, %v478
      %v495 = vpack.c.bf16 %v479, %v479
      %v496 = vpack.c.bf16 %v480, %v480
      %v497 = vpack.c.bf16 %v481, %v481
      %v498 = vpack.c.bf16 %v482, %v482
      %v499 = vpack.c.bf16 %v483, %v483
      %v500 = vpack.c.bf16 %v484, %v484
      %501 = vst [vmem:[%s194] sm:$0xf] %v485
      %502 = vst [vmem:[%s194 + $0x4] sm:$0xf] %v486
      %503 = vst [vmem:[%s194 + $0x8] sm:$0xf] %v487
      %504 = vst [vmem:[%s194 + $0xc] sm:$0xf] %v488
      %505 = vst [vmem:[%s194 + $0x10] sm:$0xf] %v489
      %506 = vst [vmem:[%s194 + $0x14] sm:$0xf] %v490
      %507 = vst [vmem:[%s194 + $0x18] sm:$0xf] %v491
      %508 = vst [vmem:[%s194 + $0x1c] sm:$0xf] %v492
      %509 = vst [vmem:[%s194 + $0x20] sm:$0xf] %v493
      %510 = vst [vmem:[%s194 + $0x24] sm:$0xf] %v494
      %511 = vst [vmem:[%s194 + $0x28] sm:$0xf] %v495
      %512 = vst [vmem:[%s194 + $0x2c] sm:$0xf] %v496
      %513 = vst [vmem:[%s194 + $0x30] sm:$0xf] %v497
      %514 = vst [vmem:[%s194 + $0x34] sm:$0xf] %v498
      %515 = vst [vmem:[%s194 + $0x38] sm:$0xf] %v499
      %516 = vst [vmem:[%s194 + $0x3c] sm:$0xf] %v500
      %s517 = smul.u32 16, %s14
      %p518 = scmp.lt.s32.totalorder %s517, 31
      %s519 = scalar_select %p518, %s517, 31
      %s520 = smul.addr %s519, 4
      %s521 = scalar_lea.vmem %s3, %s520
      // Predicated region
      $region33: #{gcn_forward.4} parent=31 // pred_check
        %p522 = pneg %p105
      $region34: #{gcn_forward.4} parent=31 // pred_check_branch
        %524 = sbr.rel (%p522) target = $region36
      $region35: #{gcn_forward.4} parent=31 // pred_region
        %s525 = smul.u32 16, %s14
      $region36: #{gcn_forward.4} parent=31 // pred_fallthru
        _
    $region32: #{gcn_forward.4} parent=5 // pred_fallthru
      _
    %p526 = scmp.le.s32.totalorder 2, %s9
    // Predicated region
    $region37: #{gcn_forward.4} parent=5 // pred_check
      %p527 = pneg %p526
    $region38: #{gcn_forward.4} parent=5 // pred_check_branch
      %529 = sbr.rel (%p527) target = $region40
    $region39: #{gcn_forward.4} parent=5 // pred_region
      %s530 = ssub.s32 %s9, 2
      // Predicated region
      $region41: #{gcn_forward.4} parent=39 // pred_check
        %p531 = pneg %p111
      $region42: #{gcn_forward.4} parent=39 // pred_check_branch
        %533 = sbr.rel (%p531) target = $region44
      $region43: #{gcn_forward.4} parent=39 // pred_region
        %s534 = smul.u32 16, %s15
        %p535 = scmp.lt.s32.totalorder %s534, 31
        %s536 = scalar_select %p535, %s534, 31
        %s537 = smul.addr %s536, 4
        %s538 = scalar_lea.vmem %s3, %s537
      $region44: #{gcn_forward.4} parent=39 // pred_fallthru
        _
    $region40: #{gcn_forward.4} parent=5 // pred_fallthru
      _
  $region6: #{gcn_forward.4} parent=0 // loop_footer
    %s13 = sadd.s32 1, %s9
  $region7: #{gcn_forward.4} parent=0 // loop_footer_branch
    %8 = sbr.rel target = $region3
  $region8: #{gcn_forward.4} parent=0 // loop_exit
    _

// kernel: gcn_forward.5
$region0: #{gcn_forward.5}
  #allocation0 [shape = 'u32[]', space=smem, size = 0x4, offset = 0x4, fixed_abs, tag = 'smem constant byte address 0x4 - core index']
  #allocation1 [shape = 'u32[72,128]{1,0:T(1,128)}', space=vmem, size = 0x9000, scoped, tag = 'internal scratch']
  #allocation2 [shape = 'f32[128,128]{1,0:T(8,128)}', space=vmem, size = 0x10000, scoped, tag = 'scratch operand']
  %s0 = inlined_call_operand.vmem [shape: bf16[256,256], index: 0, kind: input, shape index: {}]
  %s1 = inlined_call_operand.vmem [shape: bf16[256,128], index: 1, kind: input, shape index: {}]
  %s2 = inlined_call_operand.vmem [shape: f32[256,1], index: 2, kind: input, shape index: {}]
  %s3 = inlined_call_operand.vmem [shape: f32[1,128], index: 3, kind: input, shape index: {}]
  %s4 = inlined_call_operand.vmem [shape: bf16[256,128], index: 4, kind: output, shape index: {}]
  %s5 = sld [smem:[#allocation0]]
  $region57: #{gcn_forward.5} parent=0
    _
  %s7 = ssub.s32 1, %s5
  %s8 = scalar_select 0, %s7, %s5
  loop: start=0, step=1, limit=4
  $region2: #{gcn_forward.5} parent=0 // loop_pre_header
    _
  $region3: #{gcn_forward.5} parent=0 // loop_header
    %s10 = sphi 0, %s14
    %p11 = scmp.ge.s32.totalorder %s10, 4
    %s17 = sphi 0, %s29
    %s18 = sphi 0, %s25
    %s19 = sphi 0, %s17
    %s20 = sphi 0, %s18
    %s21 = sphi 0, %s19
    %s22 = sphi 0, %s20
    %s34 = sphi 0, %s36
    %s37 = sphi 0, %s34
    %s38 = sphi 0, %s37
    %s54 = sphi 0, %s38
    %s60 = sphi 0, %s62
    %s63 = sphi 0, %s60
    %s64 = sphi 0, %s63
    %s80 = sphi 0, %s64
    %s86 = sphi 0, %s88
    %s89 = sphi 0, %s86
    %s90 = sphi 0, %s89
    %s106 = sphi 0, %s90
    %s110 = sphi 0, %s110
    %s112 = sphi 0, %s110
    %s113 = sphi 0, %s112
    %s127 = sphi 0, %s113
    %s133 = sphi 0, %s135
    %s136 = sphi 0, %s133
    %s137 = sphi 0, %s136
    %s153 = sphi 0, %s137
  $region4: #{gcn_forward.5} parent=0 // loop_header_branch
    %13 = sbr.rel (%p11) target = $region8
  $region5: #{gcn_forward.5} parent=0 // loop_body
    %s15 = ssub.s32 %s10, 1
    %s16 = ssub.s32 %s10, 2
    %s23 = sadd.s32 1, %s18
    %p24 = scmp.ge.s32.totalorder %s23, 1
    %s25 = scalar_select %p24, 0, %s23
    %s26 = sadd.s32 1, %s17
    %s27 = scalar_select %p24, %s26, %s17
    %p28 = scmp.ge.s32.totalorder %s27, 2
    %s29 = scalar_select %p28, 0, %s27
    %s30 = ssub.s32 %s17, %s29
    %s31 = ssub.s32 %s18, %s25
    %s32 = sor.u32 %s30, %s31
    %p33 = scmp.eq.s32.totalorder %s32, 0
    %s35 = sadd.s32 %s34, 1
    %s36 = scalar_select %p33, %s34, %s35
    %p39 = pneg %p33
    %p40 = scmp.eq.s32.totalorder %s10, 1
    %p41 = por %p39, %p40
    %p42 = scmp.ne.s32.totalorder %s34, %s37
    %p43 = scmp.eq.s32.totalorder %s10, 0
    %p44 = por %p42, %p43
    %p45 = scmp.ne.s32.totalorder %s34, %s37
    %p46 = scmp.eq.s32.totalorder %s15, 1
    %p47 = por %p45, %p46
    %p48 = scmp.ne.s32.totalorder %s37, %s38
    %p49 = scmp.eq.s32.totalorder %s15, 0
    %p50 = por %p48, %p49
    %p51 = scmp.ne.s32.totalorder %s37, %s38
    %p52 = scmp.eq.s32.totalorder %s16, 1
    %p53 = por %p51, %p52
    %p55 = scmp.ne.s32.totalorder %s38, %s54
    %p56 = scmp.eq.s32.totalorder %s16, 0
    %p57 = por %p55, %p56
    %s58 = ssub.s32 %s18, %s25
    %p59 = scmp.eq.s32.totalorder %s58, 0
    %s61 = sadd.s32 %s60, 1
    %s62 = scalar_select %p59, %s60, %s61
    %p65 = pneg %p59
    %p66 = scmp.eq.s32.totalorder %s10, 1
    %p67 = por %p65, %p66
    %p68 = scmp.ne.s32.totalorder %s60, %s63
    %p69 = scmp.eq.s32.totalorder %s10, 0
    %p70 = por %p68, %p69
    %p71 = scmp.ne.s32.totalorder %s60, %s63
    %p72 = scmp.eq.s32.totalorder %s15, 1
    %p73 = por %p71, %p72
    %p74 = scmp.ne.s32.totalorder %s63, %s64
    %p75 = scmp.eq.s32.totalorder %s15, 0
    %p76 = por %p74, %p75
    %p77 = scmp.ne.s32.totalorder %s63, %s64
    %p78 = scmp.eq.s32.totalorder %s16, 1
    %p79 = por %p77, %p78
    %p81 = scmp.ne.s32.totalorder %s64, %s80
    %p82 = scmp.eq.s32.totalorder %s16, 0
    %p83 = por %p81, %p82
    %s84 = ssub.s32 %s17, %s29
    %p85 = scmp.eq.s32.totalorder %s84, 0
    %s87 = sadd.s32 %s86, 1
    %s88 = scalar_select %p85, %s86, %s87
    %p91 = pneg %p85
    %p92 = scmp.eq.s32.totalorder %s10, 1
    %p93 = por %p91, %p92
    %p94 = scmp.ne.s32.totalorder %s86, %s89
    %p95 = scmp.eq.s32.totalorder %s10, 0
    %p96 = por %p94, %p95
    %p97 = scmp.ne.s32.totalorder %s86, %s89
    %p98 = scmp.eq.s32.totalorder %s15, 1
    %p99 = por %p97, %p98
    %p100 = scmp.ne.s32.totalorder %s89, %s90
    %p101 = scmp.eq.s32.totalorder %s15, 0
    %p102 = por %p100, %p101
    %p103 = scmp.ne.s32.totalorder %s89, %s90
    %p104 = scmp.eq.s32.totalorder %s16, 1
    %p105 = por %p103, %p104
    %p107 = scmp.ne.s32.totalorder %s90, %s106
    %p108 = scmp.eq.s32.totalorder %s16, 0
    %p109 = por %p107, %p108
    %s111 = sadd.s32 %s110, 1
    %p114 = scmp.eq.s32.totalorder %s10, 1
    %p115 = scmp.ne.s32.totalorder %s110, %s112
    %p116 = scmp.eq.s32.totalorder %s10, 0
    %p117 = por %p115, %p116
    %p118 = scmp.ne.s32.totalorder %s110, %s112
    %p119 = scmp.eq.s32.totalorder %s15, 1
    %p120 = por %p118, %p119
    %p121 = scmp.ne.s32.totalorder %s112, %s113
    %p122 = scmp.eq.s32.totalorder %s15, 0
    %p123 = por %p121, %p122
    %p124 = scmp.ne.s32.totalorder %s112, %s113
    %p125 = scmp.eq.s32.totalorder %s16, 1
    %p126 = por %p124, %p125
    %p128 = scmp.ne.s32.totalorder %s113, %s127
    %p129 = scmp.eq.s32.totalorder %s16, 0
    %p130 = por %p128, %p129
    %s131 = ssub.s32 %s17, %s29
    %p132 = scmp.eq.s32.totalorder %s131, 0
    %s134 = sadd.s32 %s133, 1
    %s135 = scalar_select %p132, %s133, %s134
    %p138 = pneg %p132
    %p139 = scmp.eq.s32.totalorder %s10, 1
    %p140 = por %p138, %p139
    %p141 = scmp.ne.s32.totalorder %s133, %s136
    %p142 = scmp.eq.s32.totalorder %s10, 0
    %p143 = por %p141, %p142
    %p144 = scmp.ne.s32.totalorder %s133, %s136
    %p145 = scmp.eq.s32.totalorder %s15, 1
    %p146 = por %p144, %p145
    %p147 = scmp.ne.s32.totalorder %s136, %s137
    %p148 = scmp.eq.s32.totalorder %s15, 0
    %p149 = por %p147, %p148
    %p150 = scmp.ne.s32.totalorder %s136, %s137
    %p151 = scmp.eq.s32.totalorder %s16, 1
    %p152 = por %p150, %p151
    %p154 = scmp.ne.s32.totalorder %s137, %s153
    %p155 = scmp.eq.s32.totalorder %s16, 0
    %p156 = por %p154, %p155
    %p157 = scmp.le.s32.totalorder 1, %s10
    %p158 = scmp.lt.s32.totalorder %s10, 3
    %p159 = pnand %p157, %p158
    %p160 = pneg %p159
    // Predicated region
    $region9: #{gcn_forward.5} parent=5 // pred_check
      _
    $region10: #{gcn_forward.5} parent=5 // pred_check_branch
      %162 = sbr.rel (%p159) target = $region12
    $region11: #{gcn_forward.5} parent=5 // pred_region
      %s163 = ssub.s32 %s10, 1
      // Predicated region
      $region13: #{gcn_forward.5} parent=11 // pred_check
        %p164 = pneg %p76
      $region14: #{gcn_forward.5} parent=11 // pred_check_branch
        %166 = sbr.rel (%p164) target = $region16
      $region15: #{gcn_forward.5} parent=11 // pred_region
        %s167 = smul.u32 32, %s20
        %p168 = scmp.lt.s32.totalorder %s167, 31
        %s169 = scalar_select %p168, %s167, 31
        %s170 = smul.addr %s169, 4
        %s171 = scalar_lea.vmem %s1, %s170
        %s172 = smul.u32 32, %s20
      $region16: #{gcn_forward.5} parent=11 // pred_fallthru
        _
      // Predicated region
      $region17: #{gcn_forward.5} parent=11 // pred_check
        %p173 = pneg %p123
      $region18: #{gcn_forward.5} parent=11 // pred_check_branch
        %175 = sbr.rel (%p173) target = $region20
      $region19: #{gcn_forward.5} parent=11 // pred_region
        _
      $region20: #{gcn_forward.5} parent=11 // pred_fallthru
        _
    $region12: #{gcn_forward.5} parent=5 // pred_fallthru
      _
    %p176 = scmp.lt.s32.totalorder %s10, 2
    // Predicated region
    $region21: #{gcn_forward.5} parent=5 // pred_check
      %p177 = pneg %p176
    $region22: #{gcn_forward.5} parent=5 // pred_check_branch
      %179 = sbr.rel (%p177) target = $region24
    $region23: #{gcn_forward.5} parent=5 // pred_region
      // Predicated region
      $region25: #{gcn_forward.5} parent=23 // pred_check
        %p180 = pneg %p44
      $region26: #{gcn_forward.5} parent=23 // pred_check_branch
        %182 = sbr.rel (%p180) target = $region28
      $region27: #{gcn_forward.5} parent=23 // pred_region
        %s183 = smul.u32 16, %s17
        %s184 = smul.u32 2, %s18
        %p185 = scmp.lt.s32.totalorder %s183, 31
        %s186 = scalar_select %p185, %s183, 31
        %p187 = scmp.lt.s32.totalorder %s184, 1
        %s188 = scalar_select %p187, %s184, 1
        %s189 = smul.addr %s186, 2
        %s190 = sadd.s32 %s188, %s189
        %s191 = smul.addr %s190, 4
        %s192 = scalar_lea.vmem %s0, %s191
        %s193 = smul.u32 16, %s17
        %s194 = smul.u32 2, %s18
      $region28: #{gcn_forward.5} parent=23 // pred_fallthru
        _
      // Predicated region
      $region29: #{gcn_forward.5} parent=23 // pred_check
        %p195 = pneg %p96
      $region30: #{gcn_forward.5} parent=23 // pred_check_branch
        %197 = sbr.rel (%p195) target = $region32
      $region31: #{gcn_forward.5} parent=23 // pred_region
        %s198 = smul.u32 16, %s17
        %p199 = scmp.lt.s32.totalorder %s198, 31
        %s200 = scalar_select %p199, %s198, 31
        %s201 = smul.addr %s200, 8
        %s202 = scalar_lea.vmem %s2, %s201
        %s203 = smul.u32 16, %s17
      $region32: #{gcn_forward.5} parent=23 // pred_fallthru
        _
    $region24: #{gcn_forward.5} parent=5 // pred_fallthru
      _
    %p204 = scmp.le.s32.totalorder 1, %s10
    %p205 = scmp.lt.s32.totalorder %s10, 3
    %p206 = pnand %p204, %p205
    %p207 = pneg %p206
    // Predicated region
    $region33: #{gcn_forward.5} parent=5 // pred_check
      _
    $region34: #{gcn_forward.5} parent=5 // pred_check_branch
      %209 = sbr.rel (%p206) target = $region36
    $region35: #{gcn_forward.5} parent=5 // pred_region
      %s210 = ssub.s32 %s10, 1
      %s211 = smul.u32 16, %s19
      %s212 = smul.u32 2, %s20
      %p213 = scmp.lt.s32.totalorder %s211, 31
      %s214 = scalar_select %p213, %s211, 31
      %p215 = scmp.lt.s32.totalorder %s212, 1
      %s216 = scalar_select %p215, %s212, 1
      %s217 = smul.addr %s214, 2
      %s218 = sadd.s32 %s216, %s217
      %s219 = smul.addr %s218, 4
      %s220 = scalar_lea.vmem %s0, %s219
      %p221 = pneg %p50
      %p222 = pneg %p47
      %s223 = smul.u32 32, %s20
      %p224 = scmp.lt.s32.totalorder %s223, 31
      %s225 = scalar_select %p224, %s223, 31
      %s226 = smul.addr %s225, 4
      %s227 = scalar_lea.vmem %s1, %s226
      %p228 = pneg %p76
      %p229 = pneg %p73
      %s230 = smul.u32 16, %s19
      %p231 = scmp.lt.s32.totalorder %s230, 31
      %s232 = scalar_select %p231, %s230, 31
      %s233 = smul.addr %s232, 8
      %s234 = scalar_lea.vmem %s2, %s233
      %p235 = pneg %p102
      %p236 = pneg %p99
      %p237 = pneg %p123
      %p238 = pneg %p120
      %p239 = pneg %p149
      %p240 = pneg %p146
      %s241 = smul.u32 16, %s19
      %p242 = scmp.lt.s32.totalorder %s241, 31
      %s243 = scalar_select %p242, %s241, 31
      %s244 = smul.addr %s243, 4
      %s245 = scalar_lea.vmem %s4, %s244
      %s246 = smul.u32 16, %s19
      %s247 = smul.u32 2, %s20
      %p248 = scmp.lt.s32.totalorder %s246, 31
      %s249 = scalar_select %p248, %s246, 31
      %p250 = scmp.lt.s32.totalorder %s247, 1
      %s251 = scalar_select %p250, %s247, 1
      %s252 = smul.addr %s249, 2
      %s253 = sadd.s32 %s251, %s252
      %s254 = smul.addr %s253, 4
      %s255 = scalar_lea.vmem %s0, %s254
      %s256 = smul.u32 16, %s19
      %s257 = smul.u32 2, %s20
      %s258 = smul.u32 32, %s20
      %p259 = scmp.lt.s32.totalorder %s258, 31
      %s260 = scalar_select %p259, %s258, 31
      %s261 = smul.addr %s260, 4
      %s262 = scalar_lea.vmem %s1, %s261
      %s263 = smul.u32 32, %s20
      %s264 = smul.u32 16, %s19
      %p265 = scmp.lt.s32.totalorder %s264, 31
      %s266 = scalar_select %p265, %s264, 31
      %s267 = smul.addr %s266, 8
      %s268 = scalar_lea.vmem %s2, %s267
      %s269 = smul.u32 16, %s19
      %s270 = smul.u32 16, %s19
      %p271 = scmp.lt.s32.totalorder %s270, 31
      %s272 = scalar_select %p271, %s270, 31
      %s273 = smul.addr %s272, 4
      %s274 = scalar_lea.vmem %s4, %s273
      %s275 = smul.u32 16, %s19
      %p276 = scmp.eq.s32.totalorder %s20, 0
      // Predicated region
      $region37: #{gcn_forward.5} parent=35 // pred_check
        %p277 = pneg %p276
      $region38: #{gcn_forward.5} parent=35 // pred_check_branch
        %279 = sbr.rel (%p277) target = $region40
      $region39: #{gcn_forward.5} parent=35 // pred_region
        %280 = vst [vmem:[#allocation2] sm:$0xff] 0.0
        %281 = vst [vmem:[#allocation2 + $0x8] sm:$0xff] 0.0
        %282 = vst [vmem:[#allocation2 + $0x10] sm:$0xff] 0.0
        %283 = vst [vmem:[#allocation2 + $0x18] sm:$0xff] 0.0
        %284 = vst [vmem:[#allocation2 + $0x20] sm:$0xff] 0.0
        %285 = vst [vmem:[#allocation2 + $0x28] sm:$0xff] 0.0
        %286 = vst [vmem:[#allocation2 + $0x30] sm:$0xff] 0.0
        %287 = vst [vmem:[#allocation2 + $0x38] sm:$0xff] 0.0
        %288 = vst [vmem:[#allocation2 + $0x40] sm:$0xff] 0.0
        %289 = vst [vmem:[#allocation2 + $0x48] sm:$0xff] 0.0
        %290 = vst [vmem:[#allocation2 + $0x50] sm:$0xff] 0.0
        %291 = vst [vmem:[#allocation2 + $0x58] sm:$0xff] 0.0
        %292 = vst [vmem:[#allocation2 + $0x60] sm:$0xff] 0.0
        %293 = vst [vmem:[#allocation2 + $0x68] sm:$0xff] 0.0
        %294 = vst [vmem:[#allocation2 + $0x70] sm:$0xff] 0.0
        %295 = vst [vmem:[#allocation2 + $0x78] sm:$0xff] 0.0
      $region40: #{gcn_forward.5} parent=35 // pred_fallthru
        _
      %v296 = vld [vmem:[#allocation2] sm:$0xff]
      %v297 = vld [vmem:[#allocation2 + $0x8] sm:$0xff]
      %v298 = vld [vmem:[#allocation2 + $0x10] sm:$0xff]
      %v299 = vld [vmem:[#allocation2 + $0x18] sm:$0xff]
      %v300 = vld [vmem:[#allocation2 + $0x20] sm:$0xff]
      %v301 = vld [vmem:[#allocation2 + $0x28] sm:$0xff]
      %v302 = vld [vmem:[#allocation2 + $0x30] sm:$0xff]
      %v303 = vld [vmem:[#allocation2 + $0x38] sm:$0xff]
      %v304 = vld [vmem:[#allocation2 + $0x40] sm:$0xff]
      %v305 = vld [vmem:[#allocation2 + $0x48] sm:$0xff]
      %v306 = vld [vmem:[#allocation2 + $0x50] sm:$0xff]
      %v307 = vld [vmem:[#allocation2 + $0x58] sm:$0xff]
      %v308 = vld [vmem:[#allocation2 + $0x60] sm:$0xff]
      %v309 = vld [vmem:[#allocation2 + $0x68] sm:$0xff]
      %v310 = vld [vmem:[#allocation2 + $0x70] sm:$0xff]
      %v311 = vld [vmem:[#allocation2 + $0x78] sm:$0xff]
      %v312 = vld [vmem:[%s255] sm:$0xff]
      %v313 = vld [vmem:[%s255 + $0x8] sm:$0xff]
      %v314 = vld [vmem:[%s255 + $0x10] sm:$0xff]
      %v315 = vld [vmem:[%s255 + $0x18] sm:$0xff]
      %v316 = vld [vmem:[%s255 + $0x20] sm:$0xff]
      %v317 = vld [vmem:[%s255 + $0x28] sm:$0xff]
      %v318 = vld [vmem:[%s255 + $0x30] sm:$0xff]
      %v319 = vld [vmem:[%s255 + $0x38] sm:$0xff]
      %v320 = vld [vmem:[%s255 + $0x40] sm:$0xff]
      %v321 = vld [vmem:[%s255 + $0x48] sm:$0xff]
      %v322 = vld [vmem:[%s255 + $0x50] sm:$0xff]
      %v323 = vld [vmem:[%s255 + $0x58] sm:$0xff]
      %v324 = vld [vmem:[%s255 + $0x60] sm:$0xff]
      %v325 = vld [vmem:[%s255 + $0x68] sm:$0xff]
      %v326 = vld [vmem:[%s255 + $0x70] sm:$0xff]
      %v327 = vld [vmem:[%s255 + $0x78] sm:$0xff]
      %v328 = vld [vmem:[%s262] sm:$0xf]
      %v329 = vld [vmem:[%s262 + $0x4] sm:$0xf]
      %v330 = vld [vmem:[%s262 + $0x8] sm:$0xf]
      %v331 = vld [vmem:[%s262 + $0xc] sm:$0xf]
      %v332 = vld [vmem:[%s262 + $0x10] sm:$0xf]
      %v333 = vld [vmem:[%s262 + $0x14] sm:$0xf]
      %v334 = vld [vmem:[%s262 + $0x18] sm:$0xf]
      %v335 = vld [vmem:[%s262 + $0x1c] sm:$0xf]
      %v336 = vld [vmem:[%s262 + $0x20] sm:$0xf]
      %v337 = vld [vmem:[%s262 + $0x24] sm:$0xf]
      %v338 = vld [vmem:[%s262 + $0x28] sm:$0xf]
      %v339 = vld [vmem:[%s262 + $0x2c] sm:$0xf]
      %v340 = vld [vmem:[%s262 + $0x30] sm:$0xf]
      %v341 = vld [vmem:[%s262 + $0x34] sm:$0xf]
      %v342 = vld [vmem:[%s262 + $0x38] sm:$0xf]
      %v343 = vld [vmem:[%s262 + $0x3c] sm:$0xf]
      %v344 = vld [vmem:[%s262 + $0x40] sm:$0xf]
      %v345 = vld [vmem:[%s262 + $0x44] sm:$0xf]
      %v346 = vld [vmem:[%s262 + $0x48] sm:$0xf]
      %v347 = vld [vmem:[%s262 + $0x4c] sm:$0xf]
      %v348 = vld [vmem:[%s262 + $0x50] sm:$0xf]
      %v349 = vld [vmem:[%s262 + $0x54] sm:$0xf]
      %v350 = vld [vmem:[%s262 + $0x58] sm:$0xf]
      %v351 = vld [vmem:[%s262 + $0x5c] sm:$0xf]
      %v352 = vld [vmem:[%s262 + $0x60] sm:$0xf]
      %v353 = vld [vmem:[%s262 + $0x64] sm:$0xf]
      %v354 = vld [vmem:[%s262 + $0x68] sm:$0xf]
      %v355 = vld [vmem:[%s262 + $0x6c] sm:$0xf]
      %v356 = vld [vmem:[%s262 + $0x70] sm:$0xf]
      %v357 = vld [vmem:[%s262 + $0x74] sm:$0xf]
      %v358 = vld [vmem:[%s262 + $0x78] sm:$0xf]
      %v359 = vld [vmem:[%s262 + $0x7c] sm:$0xf]
      %v376 = vunpack.c.l.b16 %v312
      %v377 = vunpack.c.h.b16 %v312
      %v378 = vunpack.c.l.b16 %v313
      %v379 = vunpack.c.h.b16 %v313
      %v380 = vunpack.c.l.b16 %v314
      %v381 = vunpack.c.h.b16 %v314
      %v382 = vunpack.c.l.b16 %v315
      %v383 = vunpack.c.h.b16 %v315
      %v384 = vunpack.c.l.b16 %v316
      %v385 = vunpack.c.h.b16 %v316
      %v386 = vunpack.c.l.b16 %v317
      %v387 = vunpack.c.h.b16 %v317
      %v388 = vunpack.c.l.b16 %v318
      %v389 = vunpack.c.h.b16 %v318
      %v390 = vunpack.c.l.b16 %v319
      %v391 = vunpack.c.h.b16 %v319
      %v392 = vunpack.c.l.b16 %v320
      %v393 = vunpack.c.h.b16 %v320
      %v394 = vunpack.c.l.b16 %v321
      %v395 = vunpack.c.h.b16 %v321
      %v396 = vunpack.c.l.b16 %v322
      %v397 = vunpack.c.h.b16 %v322
      %v398 = vunpack.c.l.b16 %v323
      %v399 = vunpack.c.h.b16 %v323
      %v400 = vunpack.c.l.b16 %v324
      %v401 = vunpack.c.h.b16 %v324
      %v402 = vunpack.c.l.b16 %v325
      %v403 = vunpack.c.h.b16 %v325
      %v404 = vunpack.c.l.b16 %v326
      %v405 = vunpack.c.h.b16 %v326
      %v406 = vunpack.c.l.b16 %v327
      %v407 = vunpack.c.h.b16 %v327
      %v408 = vpack.c.b16 %v378, %v376
      %v409 = vpack.c.b16 %v379, %v377
      %v410 = vpack.c.b16 %v382, %v380
      %v411 = vpack.c.b16 %v383, %v381
      %v412 = vpack.c.b16 %v386, %v384
      %v413 = vpack.c.b16 %v387, %v385
      %v414 = vpack.c.b16 %v390, %v388
      %v415 = vpack.c.b16 %v391, %v389
      %v416 = vpack.c.b16 %v394, %v392
      %v417 = vpack.c.b16 %v395, %v393
      %v418 = vpack.c.b16 %v398, %v396
      %v419 = vpack.c.b16 %v399, %v397
      %v420 = vpack.c.b16 %v402, %v400
      %v421 = vpack.c.b16 %v403, %v401
      %v422 = vpack.c.b16 %v406, %v404
      %v423 = vpack.c.b16 %v407, %v405
      %v472 = vunpack.c.l.b16 %v328
      %v473 = vunpack.c.l.b16 %v329
      %v474 = vunpack.c.l.b16 %v330
      %v475 = vunpack.c.l.b16 %v331
      %v476 = vunpack.c.l.b16 %v332
      %v477 = vunpack.c.l.b16 %v333
      %v478 = vunpack.c.l.b16 %v334
      %v479 = vunpack.c.l.b16 %v335
      %v480 = vunpack.c.l.b16 %v336
      %v481 = vunpack.c.l.b16 %v337
      %v482 = vunpack.c.l.b16 %v338
      %v483 = vunpack.c.l.b16 %v339
      %v484 = vunpack.c.l.b16 %v340
      %v485 = vunpack.c.l.b16 %v341
      %v486 = vunpack.c.l.b16 %v342
      %v487 = vunpack.c.l.b16 %v343
      %v488 = vunpack.c.l.b16 %v344
      %v489 = vunpack.c.l.b16 %v345
      %v490 = vunpack.c.l.b16 %v346
      %v491 = vunpack.c.l.b16 %v347
      %v492 = vunpack.c.l.b16 %v348
      %v493 = vunpack.c.l.b16 %v349
      %v494 = vunpack.c.l.b16 %v350
      %v495 = vunpack.c.l.b16 %v351
      %v496 = vunpack.c.l.b16 %v352
      %v497 = vunpack.c.l.b16 %v353
      %v498 = vunpack.c.l.b16 %v354
      %v499 = vunpack.c.l.b16 %v355
      %v500 = vunpack.c.l.b16 %v356
      %v501 = vunpack.c.l.b16 %v357
      %v502 = vunpack.c.l.b16 %v358
      %v503 = vunpack.c.l.b16 %v359
      %v504 = vpack.c.b16 %v473, %v472
      %v505 = vpack.c.b16 %v475, %v474
      %v506 = vpack.c.b16 %v477, %v476
      %v507 = vpack.c.b16 %v479, %v478
      %v508 = vpack.c.b16 %v481, %v480
      %v509 = vpack.c.b16 %v483, %v482
      %v510 = vpack.c.b16 %v485, %v484
      %v511 = vpack.c.b16 %v487, %v486
      %v512 = vpack.c.b16 %v489, %v488
      %v513 = vpack.c.b16 %v491, %v490
      %v514 = vpack.c.b16 %v493, %v492
      %v515 = vpack.c.b16 %v495, %v494
      %v516 = vpack.c.b16 %v497, %v496
      %v517 = vpack.c.b16 %v499, %v498
      %v518 = vpack.c.b16 %v501, %v500
      %v519 = vpack.c.b16 %v503, %v502
      %536 = vmatpush.bf16.msra.mxu0 %v511
      %537 = vmatpush.bf16.msra.mxu0 %v510
      %538 = vmatpush.bf16.msra.mxu0 %v509
      %539 = vmatpush.bf16.msra.mxu0 %v508
      %540 = vmatpush.bf16.msra.mxu0 %v507
      %541 = vmatpush.bf16.msra.mxu0 %v506
      %542 = vmatpush.bf16.msra.mxu0 %v505
      %543 = vmatpush.bf16.msra.mxu0 %v504
      %544 = vmatmul.bf16.gmra.mxu0 %v408
      %v545 = vpop.f32.mrf.mxu0
      %v546 = vadd.f32 0.0, %v545
      %v547 = vpop.f32.mrf.mxu0
      %v548 = vadd.f32 0.0, %v547
      %549 = vmatmul.bf16.gmra.mxu0 %v410
      %v550 = vpop.f32.mrf.mxu0
      %v551 = vadd.f32 0.0, %v550
      %v552 = vpop.f32.mrf.mxu0
      %v553 = vadd.f32 0.0, %v552
      %554 = vmatmul.bf16.gmra.mxu0 %v412
      %v555 = vpop.f32.mrf.mxu0
      %v556 = vadd.f32 0.0, %v555
      %v557 = vpop.f32.mrf.mxu0
      %v558 = vadd.f32 0.0, %v557
      %559 = vmatmul.bf16.gmra.mxu0 %v414
      %v560 = vpop.f32.mrf.mxu0
      %v561 = vadd.f32 0.0, %v560
      %v562 = vpop.f32.mrf.mxu0
      %v563 = vadd.f32 0.0, %v562
      %564 = vmatmul.bf16.gmra.mxu0 %v416
      %v565 = vpop.f32.mrf.mxu0
      %v566 = vadd.f32 0.0, %v565
      %v567 = vpop.f32.mrf.mxu0
      %v568 = vadd.f32 0.0, %v567
      %569 = vmatmul.bf16.gmra.mxu0 %v418
      %v570 = vpop.f32.mrf.mxu0
      %v571 = vadd.f32 0.0, %v570
      %v572 = vpop.f32.mrf.mxu0
      %v573 = vadd.f32 0.0, %v572
      %574 = vmatmul.bf16.gmra.mxu0 %v420
      %v575 = vpop.f32.mrf.mxu0
      %v576 = vadd.f32 0.0, %v575
      %v577 = vpop.f32.mrf.mxu0
      %v578 = vadd.f32 0.0, %v577
      %579 = vmatmul.bf16.gmra.mxu0 %v422
      %v580 = vpop.f32.mrf.mxu0
      %v581 = vadd.f32 0.0, %v580
      %v582 = vpop.f32.mrf.mxu0
      %v583 = vadd.f32 0.0, %v582
      %584 = vdwg.mxu0
      %585 = vmatpush.bf16.msra.mxu0 %v519
      %586 = vmatpush.bf16.msra.mxu0 %v518
      %587 = vmatpush.bf16.msra.mxu0 %v517
      %588 = vmatpush.bf16.msra.mxu0 %v516
      %589 = vmatpush.bf16.msra.mxu0 %v515
      %590 = vmatpush.bf16.msra.mxu0 %v514
      %591 = vmatpush.bf16.msra.mxu0 %v513
      %592 = vmatpush.bf16.msra.mxu0 %v512
      %593 = vmatmul.bf16.gmra.mxu0 %v409
      %v594 = vpop.f32.mrf.mxu0
      %v595 = vadd.f32 %v546, %v594
      %v596 = vpop.f32.mrf.mxu0
      %v597 = vadd.f32 %v548, %v596
      %598 = vmatmul.bf16.gmra.mxu0 %v411
      %v599 = vpop.f32.mrf.mxu0
      %v600 = vadd.f32 %v551, %v599
      %v601 = vpop.f32.mrf.mxu0
      %v602 = vadd.f32 %v553, %v601
      %603 = vmatmul.bf16.gmra.mxu0 %v413
      %v604 = vpop.f32.mrf.mxu0
      %v605 = vadd.f32 %v556, %v604
      %v606 = vpop.f32.mrf.mxu0
      %v607 = vadd.f32 %v558, %v606
      %608 = vmatmul.bf16.gmra.mxu0 %v415
      %v609 = vpop.f32.mrf.mxu0
      %v610 = vadd.f32 %v561, %v609
      %v611 = vpop.f32.mrf.mxu0
      %v612 = vadd.f32 %v563, %v611
      %613 = vmatmul.bf16.gmra.mxu0 %v417
      %v614 = vpop.f32.mrf.mxu0
      %v615 = vadd.f32 %v566, %v614
      %v616 = vpop.f32.mrf.mxu0
      %v617 = vadd.f32 %v568, %v616
      %618 = vmatmul.bf16.gmra.mxu0 %v419
      %v619 = vpop.f32.mrf.mxu0
      %v620 = vadd.f32 %v571, %v619
      %v621 = vpop.f32.mrf.mxu0
      %v622 = vadd.f32 %v573, %v621
      %623 = vmatmul.bf16.gmra.mxu0 %v421
      %v624 = vpop.f32.mrf.mxu0
      %v625 = vadd.f32 %v576, %v624
      %v626 = vpop.f32.mrf.mxu0
      %v627 = vadd.f32 %v578, %v626
      %628 = vmatmul.bf16.gmra.mxu0 %v423
      %v629 = vpop.f32.mrf.mxu0
      %v630 = vadd.f32 %v581, %v629
      %v631 = vpop.f32.mrf.mxu0
      %v632 = vadd.f32 %v583, %v631
      %633 = vdwg.mxu0
      %v634 = vadd.f32 %v296, %v595
      %v635 = vadd.f32 %v297, %v597
      %v636 = vadd.f32 %v298, %v600
      %v637 = vadd.f32 %v299, %v602
      %v638 = vadd.f32 %v300, %v605
      %v639 = vadd.f32 %v301, %v607
      %v640 = vadd.f32 %v302, %v610
      %v641 = vadd.f32 %v303, %v612
      %v642 = vadd.f32 %v304, %v615
      %v643 = vadd.f32 %v305, %v617
      %v644 = vadd.f32 %v306, %v620
      %v645 = vadd.f32 %v307, %v622
      %v646 = vadd.f32 %v308, %v625
      %v647 = vadd.f32 %v309, %v627
      %v648 = vadd.f32 %v310, %v630
      %v649 = vadd.f32 %v311, %v632
      %650 = vst [vmem:[#allocation2] sm:$0xff] %v634
      %651 = vst [vmem:[#allocation2 + $0x8] sm:$0xff] %v635
      %652 = vst [vmem:[#allocation2 + $0x10] sm:$0xff] %v636
      %653 = vst [vmem:[#allocation2 + $0x18] sm:$0xff] %v637
      %654 = vst [vmem:[#allocation2 + $0x20] sm:$0xff] %v638
      %655 = vst [vmem:[#allocation2 + $0x28] sm:$0xff] %v639
      %656 = vst [vmem:[#allocation2 + $0x30] sm:$0xff] %v640
      %657 = vst [vmem:[#allocation2 + $0x38] sm:$0xff] %v641
      %658 = vst [vmem:[#allocation2 + $0x40] sm:$0xff] %v642
      %659 = vst [vmem:[#allocation2 + $0x48] sm:$0xff] %v643
      %660 = vst [vmem:[#allocation2 + $0x50] sm:$0xff] %v644
      %661 = vst [vmem:[#allocation2 + $0x58] sm:$0xff] %v645
      %662 = vst [vmem:[#allocation2 + $0x60] sm:$0xff] %v646
      %663 = vst [vmem:[#allocation2 + $0x68] sm:$0xff] %v647
      %664 = vst [vmem:[#allocation2 + $0x70] sm:$0xff] %v648
      %665 = vst [vmem:[#allocation2 + $0x78] sm:$0xff] %v649
      // Predicated region
      $region41: #{gcn_forward.5} parent=35 // pred_check
        %p666 = pneg %p276
      $region42: #{gcn_forward.5} parent=35 // pred_check_branch
        %668 = sbr.rel (%p666) target = $region44
      $region43: #{gcn_forward.5} parent=35 // pred_region
        %v669 = vld [vmem:[#allocation2] sm:$0xff]
        %v670 = vld [vmem:[#allocation2 + $0x8] sm:$0xff]
        %v671 = vld [vmem:[#allocation2 + $0x10] sm:$0xff]
        %v672 = vld [vmem:[#allocation2 + $0x18] sm:$0xff]
        %v673 = vld [vmem:[#allocation2 + $0x20] sm:$0xff]
        %v674 = vld [vmem:[#allocation2 + $0x28] sm:$0xff]
        %v675 = vld [vmem:[#allocation2 + $0x30] sm:$0xff]
        %v676 = vld [vmem:[#allocation2 + $0x38] sm:$0xff]
        %v677 = vld [vmem:[#allocation2 + $0x40] sm:$0xff]
        %v678 = vld [vmem:[#allocation2 + $0x48] sm:$0xff]
        %v679 = vld [vmem:[#allocation2 + $0x50] sm:$0xff]
        %v680 = vld [vmem:[#allocation2 + $0x58] sm:$0xff]
        %v681 = vld [vmem:[#allocation2 + $0x60] sm:$0xff]
        %v682 = vld [vmem:[#allocation2 + $0x68] sm:$0xff]
        %v683 = vld [vmem:[#allocation2 + $0x70] sm:$0xff]
        %v684 = vld [vmem:[#allocation2 + $0x78] sm:$0xff]
        %v685 = vld [vmem:[%s268] sm:$0xff]
        %v686 = vld [vmem:[%s268 + $0x8] sm:$0xff]
        %v687 = vld [vmem:[%s268 + $0x10] sm:$0xff]
        %v688 = vld [vmem:[%s268 + $0x18] sm:$0xff]
        %v689 = vld [vmem:[%s268 + $0x20] sm:$0xff]
        %v690 = vld [vmem:[%s268 + $0x28] sm:$0xff]
        %v691 = vld [vmem:[%s268 + $0x30] sm:$0xff]
        %v692 = vld [vmem:[%s268 + $0x38] sm:$0xff]
        %v693 = vld [vmem:[%s268 + $0x40] sm:$0xff]
        %v694 = vld [vmem:[%s268 + $0x48] sm:$0xff]
        %v695 = vld [vmem:[%s268 + $0x50] sm:$0xff]
        %v696 = vld [vmem:[%s268 + $0x58] sm:$0xff]
        %v697 = vld [vmem:[%s268 + $0x60] sm:$0xff]
        %v698 = vld [vmem:[%s268 + $0x68] sm:$0xff]
        %v699 = vld [vmem:[%s268 + $0x70] sm:$0xff]
        %v700 = vld [vmem:[%s268 + $0x78] sm:$0xff]
        %702 = vset.pattern.permute.xlu0 0
        %703 = vperm.xlu0 %702, %v685
        %v704 = vpop.permute.xlu0 %703
        %707 = vset.pattern.permute.xlu0 0
        %708 = vperm.xlu0 %707, %v686
        %v709 = vpop.permute.xlu0 %708
        %712 = vset.pattern.permute.xlu0 0
        %713 = vperm.xlu0 %712, %v687
        %v714 = vpop.permute.xlu0 %713
        %717 = vset.pattern.permute.xlu0 0
        %718 = vperm.xlu0 %717, %v688
        %v719 = vpop.permute.xlu0 %718
        %722 = vset.pattern.permute.xlu0 0
        %723 = vperm.xlu0 %722, %v689
        %v724 = vpop.permute.xlu0 %723
        %727 = vset.pattern.permute.xlu0 0
        %728 = vperm.xlu0 %727, %v690
        %v729 = vpop.permute.xlu0 %728
        %732 = vset.pattern.permute.xlu0 0
        %733 = vperm.xlu0 %732, %v691
        %v734 = vpop.permute.xlu0 %733
        %737 = vset.pattern.permute.xlu0 0
        %738 = vperm.xlu0 %737, %v692
        %v739 = vpop.permute.xlu0 %738
        %742 = vset.pattern.permute.xlu0 0
        %743 = vperm.xlu0 %742, %v693
        %v744 = vpop.permute.xlu0 %743
        %747 = vset.pattern.permute.xlu0 0
        %748 = vperm.xlu0 %747, %v694
        %v749 = vpop.permute.xlu0 %748
        %752 = vset.pattern.permute.xlu0 0
        %753 = vperm.xlu0 %752, %v695
        %v754 = vpop.permute.xlu0 %753
        %757 = vset.pattern.permute.xlu0 0
        %758 = vperm.xlu0 %757, %v696
        %v759 = vpop.permute.xlu0 %758
        %762 = vset.pattern.permute.xlu0 0
        %763 = vperm.xlu0 %762, %v697
        %v764 = vpop.permute.xlu0 %763
        %767 = vset.pattern.permute.xlu0 0
        %768 = vperm.xlu0 %767, %v698
        %v769 = vpop.permute.xlu0 %768
        %772 = vset.pattern.permute.xlu0 0
        %773 = vperm.xlu0 %772, %v699
        %v774 = vpop.permute.xlu0 %773
        %777 = vset.pattern.permute.xlu0 0
        %778 = vperm.xlu0 %777, %v700
        %v779 = vpop.permute.xlu0 %778
        %v781 = vmul.f32 %v669, %v704
        %v782 = vmul.f32 %v670, %v709
        %v783 = vmul.f32 %v671, %v714
        %v784 = vmul.f32 %v672, %v719
        %v785 = vmul.f32 %v673, %v724
        %v786 = vmul.f32 %v674, %v729
        %v787 = vmul.f32 %v675, %v734
        %v788 = vmul.f32 %v676, %v739
        %v789 = vmul.f32 %v677, %v744
        %v790 = vmul.f32 %v678, %v749
        %v791 = vmul.f32 %v679, %v754
        %v792 = vmul.f32 %v680, %v759
        %v793 = vmul.f32 %v681, %v764
        %v794 = vmul.f32 %v682, %v769
        %v795 = vmul.f32 %v683, %v774
        %v796 = vmul.f32 %v684, %v779
        %v797 = vld [vmem:[%s3] sm:$0x1]
        %v799 = vperm.slane %v797, 0
        %v801 = vadd.f32 %v781, %v799
        %v802 = vadd.f32 %v782, %v799
        %v803 = vadd.f32 %v783, %v799
        %v804 = vadd.f32 %v784, %v799
        %v805 = vadd.f32 %v785, %v799
        %v806 = vadd.f32 %v786, %v799
        %v807 = vadd.f32 %v787, %v799
        %v808 = vadd.f32 %v788, %v799
        %v809 = vadd.f32 %v789, %v799
        %v810 = vadd.f32 %v790, %v799
        %v811 = vadd.f32 %v791, %v799
        %v812 = vadd.f32 %v792, %v799
        %v813 = vadd.f32 %v793, %v799
        %v814 = vadd.f32 %v794, %v799
        %v815 = vadd.f32 %v795, %v799
        %v816 = vadd.f32 %v796, %v799
        %v817 = vmax.f32 %v801, 0.0
        %v818 = vmax.f32 %v802, 0.0
        %v819 = vmax.f32 %v803, 0.0
        %v820 = vmax.f32 %v804, 0.0
        %v821 = vmax.f32 %v805, 0.0
        %v822 = vmax.f32 %v806, 0.0
        %v823 = vmax.f32 %v807, 0.0
        %v824 = vmax.f32 %v808, 0.0
        %v825 = vmax.f32 %v809, 0.0
        %v826 = vmax.f32 %v810, 0.0
        %v827 = vmax.f32 %v811, 0.0
        %v828 = vmax.f32 %v812, 0.0
        %v829 = vmax.f32 %v813, 0.0
        %v830 = vmax.f32 %v814, 0.0
        %v831 = vmax.f32 %v815, 0.0
        %v832 = vmax.f32 %v816, 0.0
        %v833 = vpack.c.bf16 %v817, %v817
        %v834 = vpack.c.bf16 %v818, %v818
        %v835 = vpack.c.bf16 %v819, %v819
        %v836 = vpack.c.bf16 %v820, %v820
        %v837 = vpack.c.bf16 %v821, %v821
        %v838 = vpack.c.bf16 %v822, %v822
        %v839 = vpack.c.bf16 %v823, %v823
        %v840 = vpack.c.bf16 %v824, %v824
        %v841 = vpack.c.bf16 %v825, %v825
        %v842 = vpack.c.bf16 %v826, %v826
        %v843 = vpack.c.bf16 %v827, %v827
        %v844 = vpack.c.bf16 %v828, %v828
        %v845 = vpack.c.bf16 %v829, %v829
        %v846 = vpack.c.bf16 %v830, %v830
        %v847 = vpack.c.bf16 %v831, %v831
        %v848 = vpack.c.bf16 %v832, %v832
        %849 = vst [vmem:[%s274] sm:$0xf] %v833
        %850 = vst [vmem:[%s274 + $0x4] sm:$0xf] %v834
        %851 = vst [vmem:[%s274 + $0x8] sm:$0xf] %v835
        %852 = vst [vmem:[%s274 + $0xc] sm:$0xf] %v836
        %853 = vst [vmem:[%s274 + $0x10] sm:$0xf] %v837
        %854 = vst [vmem:[%s274 + $0x14] sm:$0xf] %v838
        %855 = vst [vmem:[%s274 + $0x18] sm:$0xf] %v839
        %856 = vst [vmem:[%s274 + $0x1c] sm:$0xf] %v840
        %857 = vst [vmem:[%s274 + $0x20] sm:$0xf] %v841
        %858 = vst [vmem:[%s274 + $0x24] sm:$0xf] %v842
        %859 = vst [vmem:[%s274 + $0x28] sm:$0xf] %v843
        %860 = vst [vmem:[%s274 + $0x2c] sm:$0xf] %v844
        %861 = vst [vmem:[%s274 + $0x30] sm:$0xf] %v845
        %862 = vst [vmem:[%s274 + $0x34] sm:$0xf] %v846
        %863 = vst [vmem:[%s274 + $0x38] sm:$0xf] %v847
        %864 = vst [vmem:[%s274 + $0x3c] sm:$0xf] %v848
      $region44: #{gcn_forward.5} parent=35 // pred_fallthru
        _
      %s865 = smul.u32 16, %s19
      %p866 = scmp.lt.s32.totalorder %s865, 31
      %s867 = scalar_select %p866, %s865, 31
      %s868 = smul.addr %s867, 4
      %s869 = scalar_lea.vmem %s4, %s868
      // Predicated region
      $region45: #{gcn_forward.5} parent=35 // pred_check
        %p870 = pneg %p146
      $region46: #{gcn_forward.5} parent=35 // pred_check_branch
        %872 = sbr.rel (%p870) target = $region48
      $region47: #{gcn_forward.5} parent=35 // pred_region
        %s873 = smul.u32 16, %s19
      $region48: #{gcn_forward.5} parent=35 // pred_fallthru
        _
    $region36: #{gcn_forward.5} parent=5 // pred_fallthru
      _
    %p874 = scmp.le.s32.totalorder 2, %s10
    // Predicated region
    $region49: #{gcn_forward.5} parent=5 // pred_check
      %p875 = pneg %p874
    $region50: #{gcn_forward.5} parent=5 // pred_check_branch
      %877 = sbr.rel (%p875) target = $region52
    $region51: #{gcn_forward.5} parent=5 // pred_region
      %s878 = ssub.s32 %s10, 2
      // Predicated region
      $region53: #{gcn_forward.5} parent=51 // pred_check
        %p879 = pneg %p152
      $region54: #{gcn_forward.5} parent=51 // pred_check_branch
        %881 = sbr.rel (%p879) target = $region56
      $region55: #{gcn_forward.5} parent=51 // pred_region
        %s882 = smul.u32 16, %s21
        %p883 = scmp.lt.s32.totalorder %s882, 31
        %s884 = scalar_select %p883, %s882, 31
        %s885 = smul.addr %s884, 4
        %s886 = scalar_lea.vmem %s4, %s885
      $region56: #{gcn_forward.5} parent=51 // pred_fallthru
        _
    $region52: #{gcn_forward.5} parent=5 // pred_fallthru
      _
  $region6: #{gcn_forward.5} parent=0 // loop_footer
    %s14 = sadd.s32 1, %s10
  $region7: #{gcn_forward.5} parent=0 // loop_footer_branch
    %9 = sbr.rel target = $region3
  $region8: #{gcn_forward.5} parent=0 // loop_exit
    _

// kernel: gcn_forward.7
$region0: #{gcn_forward.7}
  #allocation0 [shape = 'u32[]', space=smem, size = 0x4, offset = 0x4, fixed_abs, tag = 'smem constant byte address 0x4 - core index']
  #allocation1 [shape = 'u32[72,128]{1,0:T(1,128)}', space=vmem, size = 0x9000, scoped, tag = 'internal scratch']
  %s0 = inlined_call_operand.vmem [shape: bf16[256,256], index: 0, kind: input, shape index: {}]
  %s1 = inlined_call_operand.vmem [shape: bf16[256,128], index: 1, kind: input, shape index: {}]
  %s2 = inlined_call_operand.vmem [shape: f32[256,1], index: 2, kind: input, shape index: {}]
  %s3 = inlined_call_operand.vmem [shape: f32[1,128], index: 3, kind: input, shape index: {}]
  %s4 = inlined_call_operand.vmem [shape: f32[256,128], index: 4, kind: output, shape index: {}]
  %s5 = sld [smem:[#allocation0]]
  $region57: #{gcn_forward.7} parent=0
    _
  %s7 = ssub.s32 1, %s5
  %s8 = scalar_select 0, %s7, %s5
  loop: start=0, step=1, limit=4
  $region2: #{gcn_forward.7} parent=0 // loop_pre_header
    _
  $region3: #{gcn_forward.7} parent=0 // loop_header
    %s10 = sphi 0, %s14
    %p11 = scmp.ge.s32.totalorder %s10, 4
    %s17 = sphi 0, %s29
    %s18 = sphi 0, %s25
    %s19 = sphi 0, %s17
    %s20 = sphi 0, %s18
    %s21 = sphi 0, %s19
    %s22 = sphi 0, %s20
    %s34 = sphi 0, %s36
    %s37 = sphi 0, %s34
    %s38 = sphi 0, %s37
    %s54 = sphi 0, %s38
    %s60 = sphi 0, %s62
    %s63 = sphi 0, %s60
    %s64 = sphi 0, %s63
    %s80 = sphi 0, %s64
    %s86 = sphi 0, %s88
    %s89 = sphi 0, %s86
    %s90 = sphi 0, %s89
    %s106 = sphi 0, %s90
    %s110 = sphi 0, %s110
    %s112 = sphi 0, %s110
    %s113 = sphi 0, %s112
    %s127 = sphi 0, %s113
    %s133 = sphi 0, %s135
    %s136 = sphi 0, %s133
    %s137 = sphi 0, %s136
    %s153 = sphi 0, %s137
  $region4: #{gcn_forward.7} parent=0 // loop_header_branch
    %13 = sbr.rel (%p11) target = $region8
  $region5: #{gcn_forward.7} parent=0 // loop_body
    %s15 = ssub.s32 %s10, 1
    %s16 = ssub.s32 %s10, 2
    %s23 = sadd.s32 1, %s18
    %p24 = scmp.ge.s32.totalorder %s23, 1
    %s25 = scalar_select %p24, 0, %s23
    %s26 = sadd.s32 1, %s17
    %s27 = scalar_select %p24, %s26, %s17
    %p28 = scmp.ge.s32.totalorder %s27, 2
    %s29 = scalar_select %p28, 0, %s27
    %s30 = ssub.s32 %s17, %s29
    %s31 = ssub.s32 %s18, %s25
    %s32 = sor.u32 %s30, %s31
    %p33 = scmp.eq.s32.totalorder %s32, 0
    %s35 = sadd.s32 %s34, 1
    %s36 = scalar_select %p33, %s34, %s35
    %p39 = pneg %p33
    %p40 = scmp.eq.s32.totalorder %s10, 1
    %p41 = por %p39, %p40
    %p42 = scmp.ne.s32.totalorder %s34, %s37
    %p43 = scmp.eq.s32.totalorder %s10, 0
    %p44 = por %p42, %p43
    %p45 = scmp.ne.s32.totalorder %s34, %s37
    %p46 = scmp.eq.s32.totalorder %s15, 1
    %p47 = por %p45, %p46
    %p48 = scmp.ne.s32.totalorder %s37, %s38
    %p49 = scmp.eq.s32.totalorder %s15, 0
    %p50 = por %p48, %p49
    %p51 = scmp.ne.s32.totalorder %s37, %s38
    %p52 = scmp.eq.s32.totalorder %s16, 1
    %p53 = por %p51, %p52
    %p55 = scmp.ne.s32.totalorder %s38, %s54
    %p56 = scmp.eq.s32.totalorder %s16, 0
    %p57 = por %p55, %p56
    %s58 = ssub.s32 %s18, %s25
    %p59 = scmp.eq.s32.totalorder %s58, 0
    %s61 = sadd.s32 %s60, 1
    %s62 = scalar_select %p59, %s60, %s61
    %p65 = pneg %p59
    %p66 = scmp.eq.s32.totalorder %s10, 1
    %p67 = por %p65, %p66
    %p68 = scmp.ne.s32.totalorder %s60, %s63
    %p69 = scmp.eq.s32.totalorder %s10, 0
    %p70 = por %p68, %p69
    %p71 = scmp.ne.s32.totalorder %s60, %s63
    %p72 = scmp.eq.s32.totalorder %s15, 1
    %p73 = por %p71, %p72
    %p74 = scmp.ne.s32.totalorder %s63, %s64
    %p75 = scmp.eq.s32.totalorder %s15, 0
    %p76 = por %p74, %p75
    %p77 = scmp.ne.s32.totalorder %s63, %s64
    %p78 = scmp.eq.s32.totalorder %s16, 1
    %p79 = por %p77, %p78
    %p81 = scmp.ne.s32.totalorder %s64, %s80
    %p82 = scmp.eq.s32.totalorder %s16, 0
    %p83 = por %p81, %p82
    %s84 = ssub.s32 %s17, %s29
    %p85 = scmp.eq.s32.totalorder %s84, 0
    %s87 = sadd.s32 %s86, 1
    %s88 = scalar_select %p85, %s86, %s87
    %p91 = pneg %p85
    %p92 = scmp.eq.s32.totalorder %s10, 1
    %p93 = por %p91, %p92
    %p94 = scmp.ne.s32.totalorder %s86, %s89
    %p95 = scmp.eq.s32.totalorder %s10, 0
    %p96 = por %p94, %p95
    %p97 = scmp.ne.s32.totalorder %s86, %s89
    %p98 = scmp.eq.s32.totalorder %s15, 1
    %p99 = por %p97, %p98
    %p100 = scmp.ne.s32.totalorder %s89, %s90
    %p101 = scmp.eq.s32.totalorder %s15, 0
    %p102 = por %p100, %p101
    %p103 = scmp.ne.s32.totalorder %s89, %s90
    %p104 = scmp.eq.s32.totalorder %s16, 1
    %p105 = por %p103, %p104
    %p107 = scmp.ne.s32.totalorder %s90, %s106
    %p108 = scmp.eq.s32.totalorder %s16, 0
    %p109 = por %p107, %p108
    %s111 = sadd.s32 %s110, 1
    %p114 = scmp.eq.s32.totalorder %s10, 1
    %p115 = scmp.ne.s32.totalorder %s110, %s112
    %p116 = scmp.eq.s32.totalorder %s10, 0
    %p117 = por %p115, %p116
    %p118 = scmp.ne.s32.totalorder %s110, %s112
    %p119 = scmp.eq.s32.totalorder %s15, 1
    %p120 = por %p118, %p119
    %p121 = scmp.ne.s32.totalorder %s112, %s113
    %p122 = scmp.eq.s32.totalorder %s15, 0
    %p123 = por %p121, %p122
    %p124 = scmp.ne.s32.totalorder %s112, %s113
    %p125 = scmp.eq.s32.totalorder %s16, 1
    %p126 = por %p124, %p125
    %p128 = scmp.ne.s32.totalorder %s113, %s127
    %p129 = scmp.eq.s32.totalorder %s16, 0
    %p130 = por %p128, %p129
    %s131 = ssub.s32 %s17, %s29
    %p132 = scmp.eq.s32.totalorder %s131, 0
    %s134 = sadd.s32 %s133, 1
    %s135 = scalar_select %p132, %s133, %s134
    %p138 = pneg %p132
    %p139 = scmp.eq.s32.totalorder %s10, 1
    %p140 = por %p138, %p139
    %p141 = scmp.ne.s32.totalorder %s133, %s136
    %p142 = scmp.eq.s32.totalorder %s10, 0
    %p143 = por %p141, %p142
    %p144 = scmp.ne.s32.totalorder %s133, %s136
    %p145 = scmp.eq.s32.totalorder %s15, 1
    %p146 = por %p144, %p145
    %p147 = scmp.ne.s32.totalorder %s136, %s137
    %p148 = scmp.eq.s32.totalorder %s15, 0
    %p149 = por %p147, %p148
    %p150 = scmp.ne.s32.totalorder %s136, %s137
    %p151 = scmp.eq.s32.totalorder %s16, 1
    %p152 = por %p150, %p151
    %p154 = scmp.ne.s32.totalorder %s137, %s153
    %p155 = scmp.eq.s32.totalorder %s16, 0
    %p156 = por %p154, %p155
    %p157 = scmp.le.s32.totalorder 1, %s10
    %p158 = scmp.lt.s32.totalorder %s10, 3
    %p159 = pnand %p157, %p158
    %p160 = pneg %p159
    // Predicated region
    $region9: #{gcn_forward.7} parent=5 // pred_check
      _
    $region10: #{gcn_forward.7} parent=5 // pred_check_branch
      %162 = sbr.rel (%p159) target = $region12
    $region11: #{gcn_forward.7} parent=5 // pred_region
      %s163 = ssub.s32 %s10, 1
      // Predicated region
      $region13: #{gcn_forward.7} parent=11 // pred_check
        %p164 = pneg %p76
      $region14: #{gcn_forward.7} parent=11 // pred_check_branch
        %166 = sbr.rel (%p164) target = $region16
      $region15: #{gcn_forward.7} parent=11 // pred_region
        %s167 = smul.u32 32, %s20
        %p168 = scmp.lt.s32.totalorder %s167, 31
        %s169 = scalar_select %p168, %s167, 31
        %s170 = smul.addr %s169, 4
        %s171 = scalar_lea.vmem %s1, %s170
        %s172 = smul.u32 32, %s20
      $region16: #{gcn_forward.7} parent=11 // pred_fallthru
        _
      // Predicated region
      $region17: #{gcn_forward.7} parent=11 // pred_check
        %p173 = pneg %p123
      $region18: #{gcn_forward.7} parent=11 // pred_check_branch
        %175 = sbr.rel (%p173) target = $region20
      $region19: #{gcn_forward.7} parent=11 // pred_region
        _
      $region20: #{gcn_forward.7} parent=11 // pred_fallthru
        _
    $region12: #{gcn_forward.7} parent=5 // pred_fallthru
      _
    %p176 = scmp.lt.s32.totalorder %s10, 2
    // Predicated region
    $region21: #{gcn_forward.7} parent=5 // pred_check
      %p177 = pneg %p176
    $region22: #{gcn_forward.7} parent=5 // pred_check_branch
      %179 = sbr.rel (%p177) target = $region24
    $region23: #{gcn_forward.7} parent=5 // pred_region
      // Predicated region
      $region25: #{gcn_forward.7} parent=23 // pred_check
        %p180 = pneg %p44
      $region26: #{gcn_forward.7} parent=23 // pred_check_branch
        %182 = sbr.rel (%p180) target = $region28
      $region27: #{gcn_forward.7} parent=23 // pred_region
        %s183 = smul.u32 16, %s17
        %s184 = smul.u32 2, %s18
        %p185 = scmp.lt.s32.totalorder %s183, 31
        %s186 = scalar_select %p185, %s183, 31
        %p187 = scmp.lt.s32.totalorder %s184, 1
        %s188 = scalar_select %p187, %s184, 1
        %s189 = smul.addr %s186, 2
        %s190 = sadd.s32 %s188, %s189
        %s191 = smul.addr %s190, 4
        %s192 = scalar_lea.vmem %s0, %s191
        %s193 = smul.u32 16, %s17
        %s194 = smul.u32 2, %s18
      $region28: #{gcn_forward.7} parent=23 // pred_fallthru
        _
      // Predicated region
      $region29: #{gcn_forward.7} parent=23 // pred_check
        %p195 = pneg %p96
      $region30: #{gcn_forward.7} parent=23 // pred_check_branch
        %197 = sbr.rel (%p195) target = $region32
      $region31: #{gcn_forward.7} parent=23 // pred_region
        %s198 = smul.u32 16, %s17
        %p199 = scmp.lt.s32.totalorder %s198, 31
        %s200 = scalar_select %p199, %s198, 31
        %s201 = smul.addr %s200, 8
        %s202 = scalar_lea.vmem %s2, %s201
        %s203 = smul.u32 16, %s17
      $region32: #{gcn_forward.7} parent=23 // pred_fallthru
        _
    $region24: #{gcn_forward.7} parent=5 // pred_fallthru
      _
    %p204 = scmp.le.s32.totalorder 1, %s10
    %p205 = scmp.lt.s32.totalorder %s10, 3
    %p206 = pnand %p204, %p205
    %p207 = pneg %p206
    // Predicated region
    $region33: #{gcn_forward.7} parent=5 // pred_check
      _
    $region34: #{gcn_forward.7} parent=5 // pred_check_branch
      %209 = sbr.rel (%p206) target = $region36
    $region35: #{gcn_forward.7} parent=5 // pred_region
      %s210 = ssub.s32 %s10, 1
      %s211 = smul.u32 16, %s19
      %s212 = smul.u32 2, %s20
      %p213 = scmp.lt.s32.totalorder %s211, 31
      %s214 = scalar_select %p213, %s211, 31
      %p215 = scmp.lt.s32.totalorder %s212, 1
      %s216 = scalar_select %p215, %s212, 1
      %s217 = smul.addr %s214, 2
      %s218 = sadd.s32 %s216, %s217
      %s219 = smul.addr %s218, 4
      %s220 = scalar_lea.vmem %s0, %s219
      %p221 = pneg %p50
      %p222 = pneg %p47
      %s223 = smul.u32 32, %s20
      %p224 = scmp.lt.s32.totalorder %s223, 31
      %s225 = scalar_select %p224, %s223, 31
      %s226 = smul.addr %s225, 4
      %s227 = scalar_lea.vmem %s1, %s226
      %p228 = pneg %p76
      %p229 = pneg %p73
      %s230 = smul.u32 16, %s19
      %p231 = scmp.lt.s32.totalorder %s230, 31
      %s232 = scalar_select %p231, %s230, 31
      %s233 = smul.addr %s232, 8
      %s234 = scalar_lea.vmem %s2, %s233
      %p235 = pneg %p102
      %p236 = pneg %p99
      %p237 = pneg %p123
      %p238 = pneg %p120
      %p239 = pneg %p149
      %p240 = pneg %p146
      %s241 = smul.u32 16, %s19
      %p242 = scmp.lt.s32.totalorder %s241, 31
      %s243 = scalar_select %p242, %s241, 31
      %s244 = smul.addr %s243, 8
      %s245 = scalar_lea.vmem %s4, %s244
      %s246 = smul.u32 16, %s19
      %s247 = smul.u32 2, %s20
      %p248 = scmp.lt.s32.totalorder %s246, 31
      %s249 = scalar_select %p248, %s246, 31
      %p250 = scmp.lt.s32.totalorder %s247, 1
      %s251 = scalar_select %p250, %s247, 1
      %s252 = smul.addr %s249, 2
      %s253 = sadd.s32 %s251, %s252
      %s254 = smul.addr %s253, 4
      %s255 = scalar_lea.vmem %s0, %s254
      %s256 = smul.u32 16, %s19
      %s257 = smul.u32 2, %s20
      %s258 = smul.u32 32, %s20
      %p259 = scmp.lt.s32.totalorder %s258, 31
      %s260 = scalar_select %p259, %s258, 31
      %s261 = smul.addr %s260, 4
      %s262 = scalar_lea.vmem %s1, %s261
      %s263 = smul.u32 32, %s20
      %s264 = smul.u32 16, %s19
      %p265 = scmp.lt.s32.totalorder %s264, 31
      %s266 = scalar_select %p265, %s264, 31
      %s267 = smul.addr %s266, 8
      %s268 = scalar_lea.vmem %s2, %s267
      %s269 = smul.u32 16, %s19
      %s270 = smul.u32 16, %s19
      %p271 = scmp.lt.s32.totalorder %s270, 31
      %s272 = scalar_select %p271, %s270, 31
      %s273 = smul.addr %s272, 8
      %s274 = scalar_lea.vmem %s4, %s273
      %s275 = smul.u32 16, %s19
      %p276 = scmp.eq.s32.totalorder %s20, 0
      // Predicated region
      $region37: #{gcn_forward.7} parent=35 // pred_check
        %p277 = pneg %p276
      $region38: #{gcn_forward.7} parent=35 // pred_check_branch
        %279 = sbr.rel (%p277) target = $region40
      $region39: #{gcn_forward.7} parent=35 // pred_region
        %280 = vst [vmem:[%s274] sm:$0xff] 0.0
        %281 = vst [vmem:[%s274 + $0x8] sm:$0xff] 0.0
        %282 = vst [vmem:[%s274 + $0x10] sm:$0xff] 0.0
        %283 = vst [vmem:[%s274 + $0x18] sm:$0xff] 0.0
        %284 = vst [vmem:[%s274 + $0x20] sm:$0xff] 0.0
        %285 = vst [vmem:[%s274 + $0x28] sm:$0xff] 0.0
        %286 = vst [vmem:[%s274 + $0x30] sm:$0xff] 0.0
        %287 = vst [vmem:[%s274 + $0x38] sm:$0xff] 0.0
        %288 = vst [vmem:[%s274 + $0x40] sm:$0xff] 0.0
        %289 = vst [vmem:[%s274 + $0x48] sm:$0xff] 0.0
        %290 = vst [vmem:[%s274 + $0x50] sm:$0xff] 0.0
        %291 = vst [vmem:[%s274 + $0x58] sm:$0xff] 0.0
        %292 = vst [vmem:[%s274 + $0x60] sm:$0xff] 0.0
        %293 = vst [vmem:[%s274 + $0x68] sm:$0xff] 0.0
        %294 = vst [vmem:[%s274 + $0x70] sm:$0xff] 0.0
        %295 = vst [vmem:[%s274 + $0x78] sm:$0xff] 0.0
      $region40: #{gcn_forward.7} parent=35 // pred_fallthru
        _
      %v296 = vld [vmem:[%s274] sm:$0xff]
      %v297 = vld [vmem:[%s274 + $0x8] sm:$0xff]
      %v298 = vld [vmem:[%s274 + $0x10] sm:$0xff]
      %v299 = vld [vmem:[%s274 + $0x18] sm:$0xff]
      %v300 = vld [vmem:[%s274 + $0x20] sm:$0xff]
      %v301 = vld [vmem:[%s274 + $0x28] sm:$0xff]
      %v302 = vld [vmem:[%s274 + $0x30] sm:$0xff]
      %v303 = vld [vmem:[%s274 + $0x38] sm:$0xff]
      %v304 = vld [vmem:[%s274 + $0x40] sm:$0xff]
      %v305 = vld [vmem:[%s274 + $0x48] sm:$0xff]
      %v306 = vld [vmem:[%s274 + $0x50] sm:$0xff]
      %v307 = vld [vmem:[%s274 + $0x58] sm:$0xff]
      %v308 = vld [vmem:[%s274 + $0x60] sm:$0xff]
      %v309 = vld [vmem:[%s274 + $0x68] sm:$0xff]
      %v310 = vld [vmem:[%s274 + $0x70] sm:$0xff]
      %v311 = vld [vmem:[%s274 + $0x78] sm:$0xff]
      %v312 = vld [vmem:[%s255] sm:$0xff]
      %v313 = vld [vmem:[%s255 + $0x8] sm:$0xff]
      %v314 = vld [vmem:[%s255 + $0x10] sm:$0xff]
      %v315 = vld [vmem:[%s255 + $0x18] sm:$0xff]
      %v316 = vld [vmem:[%s255 + $0x20] sm:$0xff]
      %v317 = vld [vmem:[%s255 + $0x28] sm:$0xff]
      %v318 = vld [vmem:[%s255 + $0x30] sm:$0xff]
      %v319 = vld [vmem:[%s255 + $0x38] sm:$0xff]
      %v320 = vld [vmem:[%s255 + $0x40] sm:$0xff]
      %v321 = vld [vmem:[%s255 + $0x48] sm:$0xff]
      %v322 = vld [vmem:[%s255 + $0x50] sm:$0xff]
      %v323 = vld [vmem:[%s255 + $0x58] sm:$0xff]
      %v324 = vld [vmem:[%s255 + $0x60] sm:$0xff]
      %v325 = vld [vmem:[%s255 + $0x68] sm:$0xff]
      %v326 = vld [vmem:[%s255 + $0x70] sm:$0xff]
      %v327 = vld [vmem:[%s255 + $0x78] sm:$0xff]
      %v328 = vld [vmem:[%s262] sm:$0xf]
      %v329 = vld [vmem:[%s262 + $0x4] sm:$0xf]
      %v330 = vld [vmem:[%s262 + $0x8] sm:$0xf]
      %v331 = vld [vmem:[%s262 + $0xc] sm:$0xf]
      %v332 = vld [vmem:[%s262 + $0x10] sm:$0xf]
      %v333 = vld [vmem:[%s262 + $0x14] sm:$0xf]
      %v334 = vld [vmem:[%s262 + $0x18] sm:$0xf]
      %v335 = vld [vmem:[%s262 + $0x1c] sm:$0xf]
      %v336 = vld [vmem:[%s262 + $0x20] sm:$0xf]
      %v337 = vld [vmem:[%s262 + $0x24] sm:$0xf]
      %v338 = vld [vmem:[%s262 + $0x28] sm:$0xf]
      %v339 = vld [vmem:[%s262 + $0x2c] sm:$0xf]
      %v340 = vld [vmem:[%s262 + $0x30] sm:$0xf]
      %v341 = vld [vmem:[%s262 + $0x34] sm:$0xf]
      %v342 = vld [vmem:[%s262 + $0x38] sm:$0xf]
      %v343 = vld [vmem:[%s262 + $0x3c] sm:$0xf]
      %v344 = vld [vmem:[%s262 + $0x40] sm:$0xf]
      %v345 = vld [vmem:[%s262 + $0x44] sm:$0xf]
      %v346 = vld [vmem:[%s262 + $0x48] sm:$0xf]
      %v347 = vld [vmem:[%s262 + $0x4c] sm:$0xf]
      %v348 = vld [vmem:[%s262 + $0x50] sm:$0xf]
      %v349 = vld [vmem:[%s262 + $0x54] sm:$0xf]
      %v350 = vld [vmem:[%s262 + $0x58] sm:$0xf]
      %v351 = vld [vmem:[%s262 + $0x5c] sm:$0xf]
      %v352 = vld [vmem:[%s262 + $0x60] sm:$0xf]
      %v353 = vld [vmem:[%s262 + $0x64] sm:$0xf]
      %v354 = vld [vmem:[%s262 + $0x68] sm:$0xf]
      %v355 = vld [vmem:[%s262 + $0x6c] sm:$0xf]
      %v356 = vld [vmem:[%s262 + $0x70] sm:$0xf]
      %v357 = vld [vmem:[%s262 + $0x74] sm:$0xf]
      %v358 = vld [vmem:[%s262 + $0x78] sm:$0xf]
      %v359 = vld [vmem:[%s262 + $0x7c] sm:$0xf]
      %v376 = vunpack.c.l.b16 %v312
      %v377 = vunpack.c.h.b16 %v312
      %v378 = vunpack.c.l.b16 %v313
      %v379 = vunpack.c.h.b16 %v313
      %v380 = vunpack.c.l.b16 %v314
      %v381 = vunpack.c.h.b16 %v314
      %v382 = vunpack.c.l.b16 %v315
      %v383 = vunpack.c.h.b16 %v315
      %v384 = vunpack.c.l.b16 %v316
      %v385 = vunpack.c.h.b16 %v316
      %v386 = vunpack.c.l.b16 %v317
      %v387 = vunpack.c.h.b16 %v317
      %v388 = vunpack.c.l.b16 %v318
      %v389 = vunpack.c.h.b16 %v318
      %v390 = vunpack.c.l.b16 %v319
      %v391 = vunpack.c.h.b16 %v319
      %v392 = vunpack.c.l.b16 %v320
      %v393 = vunpack.c.h.b16 %v320
      %v394 = vunpack.c.l.b16 %v321
      %v395 = vunpack.c.h.b16 %v321
      %v396 = vunpack.c.l.b16 %v322
      %v397 = vunpack.c.h.b16 %v322
      %v398 = vunpack.c.l.b16 %v323
      %v399 = vunpack.c.h.b16 %v323
      %v400 = vunpack.c.l.b16 %v324
      %v401 = vunpack.c.h.b16 %v324
      %v402 = vunpack.c.l.b16 %v325
      %v403 = vunpack.c.h.b16 %v325
      %v404 = vunpack.c.l.b16 %v326
      %v405 = vunpack.c.h.b16 %v326
      %v406 = vunpack.c.l.b16 %v327
      %v407 = vunpack.c.h.b16 %v327
      %v408 = vpack.c.b16 %v378, %v376
      %v409 = vpack.c.b16 %v379, %v377
      %v410 = vpack.c.b16 %v382, %v380
      %v411 = vpack.c.b16 %v383, %v381
      %v412 = vpack.c.b16 %v386, %v384
      %v413 = vpack.c.b16 %v387, %v385
      %v414 = vpack.c.b16 %v390, %v388
      %v415 = vpack.c.b16 %v391, %v389
      %v416 = vpack.c.b16 %v394, %v392
      %v417 = vpack.c.b16 %v395, %v393
      %v418 = vpack.c.b16 %v398, %v396
      %v419 = vpack.c.b16 %v399, %v397
      %v420 = vpack.c.b16 %v402, %v400
      %v421 = vpack.c.b16 %v403, %v401
      %v422 = vpack.c.b16 %v406, %v404
      %v423 = vpack.c.b16 %v407, %v405
      %v472 = vunpack.c.l.b16 %v328
      %v473 = vunpack.c.l.b16 %v329
      %v474 = vunpack.c.l.b16 %v330
      %v475 = vunpack.c.l.b16 %v331
      %v476 = vunpack.c.l.b16 %v332
      %v477 = vunpack.c.l.b16 %v333
      %v478 = vunpack.c.l.b16 %v334
      %v479 = vunpack.c.l.b16 %v335
      %v480 = vunpack.c.l.b16 %v336
      %v481 = vunpack.c.l.b16 %v337
      %v482 = vunpack.c.l.b16 %v338
      %v483 = vunpack.c.l.b16 %v339
      %v484 = vunpack.c.l.b16 %v340
      %v485 = vunpack.c.l.b16 %v341
      %v486 = vunpack.c.l.b16 %v342
      %v487 = vunpack.c.l.b16 %v343
      %v488 = vunpack.c.l.b16 %v344
      %v489 = vunpack.c.l.b16 %v345
      %v490 = vunpack.c.l.b16 %v346
      %v491 = vunpack.c.l.b16 %v347
      %v492 = vunpack.c.l.b16 %v348
      %v493 = vunpack.c.l.b16 %v349
      %v494 = vunpack.c.l.b16 %v350
      %v495 = vunpack.c.l.b16 %v351
      %v496 = vunpack.c.l.b16 %v352
      %v497 = vunpack.c.l.b16 %v353
      %v498 = vunpack.c.l.b16 %v354
      %v499 = vunpack.c.l.b16 %v355
      %v500 = vunpack.c.l.b16 %v356
      %v501 = vunpack.c.l.b16 %v357
      %v502 = vunpack.c.l.b16 %v358
      %v503 = vunpack.c.l.b16 %v359
      %v504 = vpack.c.b16 %v473, %v472
      %v505 = vpack.c.b16 %v475, %v474
      %v506 = vpack.c.b16 %v477, %v476
      %v507 = vpack.c.b16 %v479, %v478
      %v508 = vpack.c.b16 %v481, %v480
      %v509 = vpack.c.b16 %v483, %v482
      %v510 = vpack.c.b16 %v485, %v484
      %v511 = vpack.c.b16 %v487, %v486
      %v512 = vpack.c.b16 %v489, %v488
      %v513 = vpack.c.b16 %v491, %v490
      %v514 = vpack.c.b16 %v493, %v492
      %v515 = vpack.c.b16 %v495, %v494
      %v516 = vpack.c.b16 %v497, %v496
      %v517 = vpack.c.b16 %v499, %v498
      %v518 = vpack.c.b16 %v501, %v500
      %v519 = vpack.c.b16 %v503, %v502
      %536 = vmatpush.bf16.msra.mxu0 %v511
      %537 = vmatpush.bf16.msra.mxu0 %v510
      %538 = vmatpush.bf16.msra.mxu0 %v509
      %539 = vmatpush.bf16.msra.mxu0 %v508
      %540 = vmatpush.bf16.msra.mxu0 %v507
      %541 = vmatpush.bf16.msra.mxu0 %v506
      %542 = vmatpush.bf16.msra.mxu0 %v505
      %543 = vmatpush.bf16.msra.mxu0 %v504
      %544 = vmatmul.bf16.gmra.mxu0 %v408
      %v545 = vpop.f32.mrf.mxu0
      %v546 = vadd.f32 0.0, %v545
      %v547 = vpop.f32.mrf.mxu0
      %v548 = vadd.f32 0.0, %v547
      %549 = vmatmul.bf16.gmra.mxu0 %v410
      %v550 = vpop.f32.mrf.mxu0
      %v551 = vadd.f32 0.0, %v550
      %v552 = vpop.f32.mrf.mxu0
      %v553 = vadd.f32 0.0, %v552
      %554 = vmatmul.bf16.gmra.mxu0 %v412
      %v555 = vpop.f32.mrf.mxu0
      %v556 = vadd.f32 0.0, %v555
      %v557 = vpop.f32.mrf.mxu0
      %v558 = vadd.f32 0.0, %v557
      %559 = vmatmul.bf16.gmra.mxu0 %v414
      %v560 = vpop.f32.mrf.mxu0
      %v561 = vadd.f32 0.0, %v560
      %v562 = vpop.f32.mrf.mxu0
      %v563 = vadd.f32 0.0, %v562
      %564 = vmatmul.bf16.gmra.mxu0 %v416
      %v565 = vpop.f32.mrf.mxu0
      %v566 = vadd.f32 0.0, %v565
      %v567 = vpop.f32.mrf.mxu0
      %v568 = vadd.f32 0.0, %v567
      %569 = vmatmul.bf16.gmra.mxu0 %v418
      %v570 = vpop.f32.mrf.mxu0
      %v571 = vadd.f32 0.0, %v570
      %v572 = vpop.f32.mrf.mxu0
      %v573 = vadd.f32 0.0, %v572
      %574 = vmatmul.bf16.gmra.mxu0 %v420
      %v575 = vpop.f32.mrf.mxu0
      %v576 = vadd.f32 0.0, %v575
      %v577 = vpop.f32.mrf.mxu0
      %v578 = vadd.f32 0.0, %v577
      %579 = vmatmul.bf16.gmra.mxu0 %v422
      %v580 = vpop.f32.mrf.mxu0
      %v581 = vadd.f32 0.0, %v580
      %v582 = vpop.f32.mrf.mxu0
      %v583 = vadd.f32 0.0, %v582
      %584 = vdwg.mxu0
      %585 = vmatpush.bf16.msra.mxu0 %v519
      %586 = vmatpush.bf16.msra.mxu0 %v518
      %587 = vmatpush.bf16.msra.mxu0 %v517
      %588 = vmatpush.bf16.msra.mxu0 %v516
      %589 = vmatpush.bf16.msra.mxu0 %v515
      %590 = vmatpush.bf16.msra.mxu0 %v514
      %591 = vmatpush.bf16.msra.mxu0 %v513
      %592 = vmatpush.bf16.msra.mxu0 %v512
      %593 = vmatmul.bf16.gmra.mxu0 %v409
      %v594 = vpop.f32.mrf.mxu0
      %v595 = vadd.f32 %v546, %v594
      %v596 = vpop.f32.mrf.mxu0
      %v597 = vadd.f32 %v548, %v596
      %598 = vmatmul.bf16.gmra.mxu0 %v411
      %v599 = vpop.f32.mrf.mxu0
      %v600 = vadd.f32 %v551, %v599
      %v601 = vpop.f32.mrf.mxu0
      %v602 = vadd.f32 %v553, %v601
      %603 = vmatmul.bf16.gmra.mxu0 %v413
      %v604 = vpop.f32.mrf.mxu0
      %v605 = vadd.f32 %v556, %v604
      %v606 = vpop.f32.mrf.mxu0
      %v607 = vadd.f32 %v558, %v606
      %608 = vmatmul.bf16.gmra.mxu0 %v415
      %v609 = vpop.f32.mrf.mxu0
      %v610 = vadd.f32 %v561, %v609
      %v611 = vpop.f32.mrf.mxu0
      %v612 = vadd.f32 %v563, %v611
      %613 = vmatmul.bf16.gmra.mxu0 %v417
      %v614 = vpop.f32.mrf.mxu0
      %v615 = vadd.f32 %v566, %v614
      %v616 = vpop.f32.mrf.mxu0
      %v617 = vadd.f32 %v568, %v616
      %618 = vmatmul.bf16.gmra.mxu0 %v419
      %v619 = vpop.f32.mrf.mxu0
      %v620 = vadd.f32 %v571, %v619
      %v621 = vpop.f32.mrf.mxu0
      %v622 = vadd.f32 %v573, %v621
      %623 = vmatmul.bf16.gmra.mxu0 %v421
      %v624 = vpop.f32.mrf.mxu0
      %v625 = vadd.f32 %v576, %v624
      %v626 = vpop.f32.mrf.mxu0
      %v627 = vadd.f32 %v578, %v626
      %628 = vmatmul.bf16.gmra.mxu0 %v423
      %v629 = vpop.f32.mrf.mxu0
      %v630 = vadd.f32 %v581, %v629
      %v631 = vpop.f32.mrf.mxu0
      %v632 = vadd.f32 %v583, %v631
      %633 = vdwg.mxu0
      %v634 = vadd.f32 %v296, %v595
      %v635 = vadd.f32 %v297, %v597
      %v636 = vadd.f32 %v298, %v600
      %v637 = vadd.f32 %v299, %v602
      %v638 = vadd.f32 %v300, %v605
      %v639 = vadd.f32 %v301, %v607
      %v640 = vadd.f32 %v302, %v610
      %v641 = vadd.f32 %v303, %v612
      %v642 = vadd.f32 %v304, %v615
      %v643 = vadd.f32 %v305, %v617
      %v644 = vadd.f32 %v306, %v620
      %v645 = vadd.f32 %v307, %v622
      %v646 = vadd.f32 %v308, %v625
      %v647 = vadd.f32 %v309, %v627
      %v648 = vadd.f32 %v310, %v630
      %v649 = vadd.f32 %v311, %v632
      %650 = vst [vmem:[%s274] sm:$0xff] %v634
      %651 = vst [vmem:[%s274 + $0x8] sm:$0xff] %v635
      %652 = vst [vmem:[%s274 + $0x10] sm:$0xff] %v636
      %653 = vst [vmem:[%s274 + $0x18] sm:$0xff] %v637
      %654 = vst [vmem:[%s274 + $0x20] sm:$0xff] %v638
      %655 = vst [vmem:[%s274 + $0x28] sm:$0xff] %v639
      %656 = vst [vmem:[%s274 + $0x30] sm:$0xff] %v640
      %657 = vst [vmem:[%s274 + $0x38] sm:$0xff] %v641
      %658 = vst [vmem:[%s274 + $0x40] sm:$0xff] %v642
      %659 = vst [vmem:[%s274 + $0x48] sm:$0xff] %v643
      %660 = vst [vmem:[%s274 + $0x50] sm:$0xff] %v644
      %661 = vst [vmem:[%s274 + $0x58] sm:$0xff] %v645
      %662 = vst [vmem:[%s274 + $0x60] sm:$0xff] %v646
      %663 = vst [vmem:[%s274 + $0x68] sm:$0xff] %v647
      %664 = vst [vmem:[%s274 + $0x70] sm:$0xff] %v648
      %665 = vst [vmem:[%s274 + $0x78] sm:$0xff] %v649
      // Predicated region
      $region41: #{gcn_forward.7} parent=35 // pred_check
        %p666 = pneg %p276
      $region42: #{gcn_forward.7} parent=35 // pred_check_branch
        %668 = sbr.rel (%p666) target = $region44
      $region43: #{gcn_forward.7} parent=35 // pred_region
        %v669 = vld [vmem:[%s274] sm:$0xff]
        %v670 = vld [vmem:[%s274 + $0x8] sm:$0xff]
        %v671 = vld [vmem:[%s274 + $0x10] sm:$0xff]
        %v672 = vld [vmem:[%s274 + $0x18] sm:$0xff]
        %v673 = vld [vmem:[%s274 + $0x20] sm:$0xff]
        %v674 = vld [vmem:[%s274 + $0x28] sm:$0xff]
        %v675 = vld [vmem:[%s274 + $0x30] sm:$0xff]
        %v676 = vld [vmem:[%s274 + $0x38] sm:$0xff]
        %v677 = vld [vmem:[%s274 + $0x40] sm:$0xff]
        %v678 = vld [vmem:[%s274 + $0x48] sm:$0xff]
        %v679 = vld [vmem:[%s274 + $0x50] sm:$0xff]
        %v680 = vld [vmem:[%s274 + $0x58] sm:$0xff]
        %v681 = vld [vmem:[%s274 + $0x60] sm:$0xff]
        %v682 = vld [vmem:[%s274 + $0x68] sm:$0xff]
        %v683 = vld [vmem:[%s274 + $0x70] sm:$0xff]
        %v684 = vld [vmem:[%s274 + $0x78] sm:$0xff]
        %v685 = vld [vmem:[%s268] sm:$0xff]
        %v686 = vld [vmem:[%s268 + $0x8] sm:$0xff]
        %v687 = vld [vmem:[%s268 + $0x10] sm:$0xff]
        %v688 = vld [vmem:[%s268 + $0x18] sm:$0xff]
        %v689 = vld [vmem:[%s268 + $0x20] sm:$0xff]
        %v690 = vld [vmem:[%s268 + $0x28] sm:$0xff]
        %v691 = vld [vmem:[%s268 + $0x30] sm:$0xff]
        %v692 = vld [vmem:[%s268 + $0x38] sm:$0xff]
        %v693 = vld [vmem:[%s268 + $0x40] sm:$0xff]
        %v694 = vld [vmem:[%s268 + $0x48] sm:$0xff]
        %v695 = vld [vmem:[%s268 + $0x50] sm:$0xff]
        %v696 = vld [vmem:[%s268 + $0x58] sm:$0xff]
        %v697 = vld [vmem:[%s268 + $0x60] sm:$0xff]
        %v698 = vld [vmem:[%s268 + $0x68] sm:$0xff]
        %v699 = vld [vmem:[%s268 + $0x70] sm:$0xff]
        %v700 = vld [vmem:[%s268 + $0x78] sm:$0xff]
        %702 = vset.pattern.permute.xlu0 0
        %703 = vperm.xlu0 %702, %v685
        %v704 = vpop.permute.xlu0 %703
        %707 = vset.pattern.permute.xlu0 0
        %708 = vperm.xlu0 %707, %v686
        %v709 = vpop.permute.xlu0 %708
        %712 = vset.pattern.permute.xlu0 0
        %713 = vperm.xlu0 %712, %v687
        %v714 = vpop.permute.xlu0 %713
        %717 = vset.pattern.permute.xlu0 0
        %718 = vperm.xlu0 %717, %v688
        %v719 = vpop.permute.xlu0 %718
        %722 = vset.pattern.permute.xlu0 0
        %723 = vperm.xlu0 %722, %v689
        %v724 = vpop.permute.xlu0 %723
        %727 = vset.pattern.permute.xlu0 0
        %728 = vperm.xlu0 %727, %v690
        %v729 = vpop.permute.xlu0 %728
        %732 = vset.pattern.permute.xlu0 0
        %733 = vperm.xlu0 %732, %v691
        %v734 = vpop.permute.xlu0 %733
        %737 = vset.pattern.permute.xlu0 0
        %738 = vperm.xlu0 %737, %v692
        %v739 = vpop.permute.xlu0 %738
        %742 = vset.pattern.permute.xlu0 0
        %743 = vperm.xlu0 %742, %v693
        %v744 = vpop.permute.xlu0 %743
        %747 = vset.pattern.permute.xlu0 0
        %748 = vperm.xlu0 %747, %v694
        %v749 = vpop.permute.xlu0 %748
        %752 = vset.pattern.permute.xlu0 0
        %753 = vperm.xlu0 %752, %v695
        %v754 = vpop.permute.xlu0 %753
        %757 = vset.pattern.permute.xlu0 0
        %758 = vperm.xlu0 %757, %v696
        %v759 = vpop.permute.xlu0 %758
        %762 = vset.pattern.permute.xlu0 0
        %763 = vperm.xlu0 %762, %v697
        %v764 = vpop.permute.xlu0 %763
        %767 = vset.pattern.permute.xlu0 0
        %768 = vperm.xlu0 %767, %v698
        %v769 = vpop.permute.xlu0 %768
        %772 = vset.pattern.permute.xlu0 0
        %773 = vperm.xlu0 %772, %v699
        %v774 = vpop.permute.xlu0 %773
        %777 = vset.pattern.permute.xlu0 0
        %778 = vperm.xlu0 %777, %v700
        %v779 = vpop.permute.xlu0 %778
        %v781 = vmul.f32 %v669, %v704
        %v782 = vmul.f32 %v670, %v709
        %v783 = vmul.f32 %v671, %v714
        %v784 = vmul.f32 %v672, %v719
        %v785 = vmul.f32 %v673, %v724
        %v786 = vmul.f32 %v674, %v729
        %v787 = vmul.f32 %v675, %v734
        %v788 = vmul.f32 %v676, %v739
        %v789 = vmul.f32 %v677, %v744
        %v790 = vmul.f32 %v678, %v749
        %v791 = vmul.f32 %v679, %v754
        %v792 = vmul.f32 %v680, %v759
        %v793 = vmul.f32 %v681, %v764
        %v794 = vmul.f32 %v682, %v769
        %v795 = vmul.f32 %v683, %v774
        %v796 = vmul.f32 %v684, %v779
        %v797 = vld [vmem:[%s3] sm:$0x1]
        %v799 = vperm.slane %v797, 0
        %v801 = vadd.f32 %v781, %v799
        %v802 = vadd.f32 %v782, %v799
        %v803 = vadd.f32 %v783, %v799
        %v804 = vadd.f32 %v784, %v799
        %v805 = vadd.f32 %v785, %v799
        %v806 = vadd.f32 %v786, %v799
        %v807 = vadd.f32 %v787, %v799
        %v808 = vadd.f32 %v788, %v799
        %v809 = vadd.f32 %v789, %v799
        %v810 = vadd.f32 %v790, %v799
        %v811 = vadd.f32 %v791, %v799
        %v812 = vadd.f32 %v792, %v799
        %v813 = vadd.f32 %v793, %v799
        %v814 = vadd.f32 %v794, %v799
        %v815 = vadd.f32 %v795, %v799
        %v816 = vadd.f32 %v796, %v799
        %817 = vst [vmem:[%s274] sm:$0xff] %v801
        %818 = vst [vmem:[%s274 + $0x8] sm:$0xff] %v802
        %819 = vst [vmem:[%s274 + $0x10] sm:$0xff] %v803
        %820 = vst [vmem:[%s274 + $0x18] sm:$0xff] %v804
        %821 = vst [vmem:[%s274 + $0x20] sm:$0xff] %v805
        %822 = vst [vmem:[%s274 + $0x28] sm:$0xff] %v806
        %823 = vst [vmem:[%s274 + $0x30] sm:$0xff] %v807
        %824 = vst [vmem:[%s274 + $0x38] sm:$0xff] %v808
        %825 = vst [vmem:[%s274 + $0x40] sm:$0xff] %v809
        %826 = vst [vmem:[%s274 + $0x48] sm:$0xff] %v810
        %827 = vst [vmem:[%s274 + $0x50] sm:$0xff] %v811
        %828 = vst [vmem:[%s274 + $0x58] sm:$0xff] %v812
        %829 = vst [vmem:[%s274 + $0x60] sm:$0xff] %v813
        %830 = vst [vmem:[%s274 + $0x68] sm:$0xff] %v814
        %831 = vst [vmem:[%s274 + $0x70] sm:$0xff] %v815
        %832 = vst [vmem:[%s274 + $0x78] sm:$0xff] %v816
      $region44: #{gcn_forward.7} parent=35 // pred_fallthru
        _
      %s833 = smul.u32 16, %s19
      %p834 = scmp.lt.s32.totalorder %s833, 31
      %s835 = scalar_select %p834, %s833, 31
      %s836 = smul.addr %s835, 8
      %s837 = scalar_lea.vmem %s4, %s836
      // Predicated region
      $region45: #{gcn_forward.7} parent=35 // pred_check
        %p838 = pneg %p146
      $region46: #{gcn_forward.7} parent=35 // pred_check_branch
        %840 = sbr.rel (%p838) target = $region48
      $region47: #{gcn_forward.7} parent=35 // pred_region
        %s841 = smul.u32 16, %s19
      $region48: #{gcn_forward.7} parent=35 // pred_fallthru
        _
    $region36: #{gcn_forward.7} parent=5 // pred_fallthru
      _
    %p842 = scmp.le.s32.totalorder 2, %s10
    // Predicated region
    $region49: #{gcn_forward.7} parent=5 // pred_check
      %p843 = pneg %p842
    $region50: #{gcn_forward.7} parent=5 // pred_check_branch
      %845 = sbr.rel (%p843) target = $region52
    $region51: #{gcn_forward.7} parent=5 // pred_region
      %s846 = ssub.s32 %s10, 2
      // Predicated region
      $region53: #{gcn_forward.7} parent=51 // pred_check
        %p847 = pneg %p152
      $region54: #{gcn_forward.7} parent=51 // pred_check_branch
        %849 = sbr.rel (%p847) target = $region56
      $region55: #{gcn_forward.7} parent=51 // pred_region
        %s850 = smul.u32 16, %s21
        %p851 = scmp.lt.s32.totalorder %s850, 31
        %s852 = scalar_select %p851, %s850, 31
        %s853 = smul.addr %s852, 8
        %s854 = scalar_lea.vmem %s4, %s853
      $region56: #{gcn_forward.7} parent=51 // pred_fallthru
        _
    $region52: #{gcn_forward.7} parent=5 // pred_fallthru
      _
  $region6: #{gcn_forward.7} parent=0 // loop_footer
    %s14 = sadd.s32 1, %s10
  $region7: #{gcn_forward.7} parent=0 // loop_footer_branch
    %9 = sbr.rel target = $region3
  $region8: #{gcn_forward.7} parent=0 // loop_exit
    _

</llo_original>
